<compile_context>
chip_gen: v6e
topology: v6e:2x2x1
jax: 0.10.0
libtpu: 0.0.40
codegen_flags: <defaults>
</compile_context>

<pallas_src>
import numpy as np
import jax
import jax.numpy as jnp
from jax import lax
from jax.experimental import pallas as pl
from jax.experimental.pallas import tpu as pltpu


def _round_up(x, m):
    return ((x + m - 1) // m) * m


# --------------------------------------------------------------------------- #
# Path A: whole weight tensor resident in VMEM; grid over row tiles (parallel).
# --------------------------------------------------------------------------- #
def _make_resident_kernel(nseg, u, v, tz, coefficients, compute_dtype):
    def kernel(g_lo_ref, g_hi_ref, start_ref, end_ref, x_ref, w_ref, o_ref):
        # g_lo_ref / g_hi_ref : SMEM (num_tiles,) -- group range intersecting each tile
        # start_ref / end_ref : SMEM (C,)         -- global row range of each group
        # x_ref : (tz, U) row tile     w_ref : (C*NSEG, U, V) resident weight tensor
        # o_ref : (tz, NSEG*V)
        t = pl.program_id(0)
        row0 = t * tz
        x = x_ref[...]
        rows = lax.broadcasted_iota(jnp.int32, (tz, 1), 0) + row0

        o_ref[...] = jnp.zeros_like(o_ref)

        g_lo = g_lo_ref[t]
        g_hi = g_hi_ref[t]

        @pl.loop(g_lo, g_hi)
        def _(g):
            lo = start_ref[g]
            hi = end_ref[g]
            mask = (rows >= lo) & (rows < hi)                 # (tz, 1)
            xg = jnp.where(mask, x, jnp.zeros_like(x))        # only this group's rows
            if compute_dtype is not None:
                xg = xg.astype(compute_dtype)
            ys = []
            for s in range(nseg):
                w_s = w_ref[g * nseg + s]                     # (U, V), dynamic row idx
                if compute_dtype is not None:
                    w_s = w_s.astype(compute_dtype)
                y = jnp.dot(xg, w_s, preferred_element_type=jnp.float32)
                ys.append(coefficients[s] * y)                # coeff applied in f32
            y_full = ys[0] if nseg == 1 else jnp.concatenate(ys, axis=-1)
            o_ref[...] += y_full.astype(o_ref.dtype)

    return kernel


def _resident_path(x, w3, counts, *, nseg, u, v, tz, coefficients, out_dtype,
                   compute_dtype):
    Z = x.shape[0]
    C = counts.shape[0]
    nv = nseg * v
    num_tiles = pl.cdiv(Z, tz)

    counts = counts.astype(jnp.int32)
    ends = jnp.cumsum(counts).astype(jnp.int32)
    starts = (ends - counts).astype(jnp.int32)

    r0 = jnp.arange(num_tiles, dtype=jnp.int32) * tz
    r1 = r0 + tz
    g_lo = jnp.searchsorted(ends, r0, side="right").astype(jnp.int32)   # first end >  r0
    g_hi = jnp.searchsorted(starts, r1, side="left").astype(jnp.int32)  # first start >= r1
    g_lo = jnp.minimum(g_lo, C)
    g_hi = jnp.clip(g_hi, g_lo, C)

    kernel = _make_resident_kernel(nseg, u, v, tz, coefficients, compute_dtype)
    cost = pl.CostEstimate(
        flops=2 * Z * u * nv,
        transcendentals=0,
        bytes_accessed=(x.size * x.dtype.itemsize
                        + w3.size * w3.dtype.itemsize
                        + Z * nv * jnp.dtype(out_dtype).itemsize),
    )

    return pl.pallas_call(
        kernel,
        out_shape=jax.ShapeDtypeStruct((Z, nv), out_dtype),
        grid_spec=pltpu.PrefetchScalarGridSpec(
            num_scalar_prefetch=4,
            grid=(num_tiles,),
            in_specs=[
                pl.BlockSpec((tz, u), lambda t, gl, gh, st, en: (t, 0)),
                # whole weight tensor, constant index -> DMA'd once, stays resident
                pl.BlockSpec((C * nseg, u, v), lambda t, gl, gh, st, en: (0, 0, 0)),
            ],
            out_specs=pl.BlockSpec((tz, nv), lambda t, gl, gh, st, en: (t, 0)),
        ),
        compiler_params=pltpu.CompilerParams(dimension_semantics=("parallel",)),
        cost_estimate=cost,
    )(g_lo, g_hi, starts, ends, x, w3)


# --------------------------------------------------------------------------- #
# Path B: (group, row-tile) visit grid — general fallback when W is too large to
# keep resident in VMEM.  Output tiles are revisited -> axis must be "arbitrary".
# --------------------------------------------------------------------------- #
def _make_visit_kernel(nseg, u, v, tz, coefficients, compute_dtype):
    def kernel(gid_ref, tile_ref, lo_ref, hi_ref, first_ref, x_ref, w_ref, o_ref):
        # gid_ref / tile_ref consumed by the index_maps; lo/hi are tile-local rows.
        s_idx = pl.program_id(0)
        lo = lo_ref[s_idx]
        hi = hi_ref[s_idx]
        x = x_ref[...]
        rows = lax.broadcasted_iota(jnp.int32, (tz, 1), 0)
        mask = (rows >= lo) & (rows < hi)
        xg = jnp.where(mask, x, jnp.zeros_like(x))
        if compute_dtype is not None:
            xg = xg.astype(compute_dtype)

        @pl.when(first_ref[s_idx] == 1)
        def _():
            o_ref[...] = jnp.zeros_like(o_ref)

        ys = []
        for s in range(nseg):
            w_s = w_ref[s]
            if compute_dtype is not None:
                w_s = w_s.astype(compute_dtype)
            y = jnp.dot(xg, w_s, preferred_element_type=jnp.float32)
            ys.append(coefficients[s] * y)
        y_full = ys[0] if nseg == 1 else jnp.concatenate(ys, axis=-1)
        o_ref[...] += y_full.astype(o_ref.dtype)

    return kernel


def _visit_path(x, w3, counts, *, nseg, u, v, tz, coefficients, out_dtype,
                compute_dtype):
    Z = x.shape[0]
    C = counts.shape[0]
    nv = nseg * v
    num_row_tiles = pl.cdiv(Z, tz)
    num_visits = num_row_tiles + max(C - 1, 0)     # static upper bound on visits

    counts = counts.astype(jnp.int32)
    ends = jnp.cumsum(counts).astype(jnp.int32)
    starts = (ends - counts).astype(jnp.int32)

    nonempty = counts > 0
    first_tile = starts // tz
    last_tile = jnp.where(nonempty, jnp.maximum(ends - 1, 0) // tz, first_tile)
    visits = jnp.where(nonempty, last_tile - first_tile + 1, 0).astype(jnp.int32)
    vcsum = jnp.cumsum(visits)
    vstart = (vcsum - visits).astype(jnp.int32)
    total_real = vcsum[-1]

    vid = jnp.arange(num_visits, dtype=jnp.int32)
    g = jnp.minimum(jnp.searchsorted(vcsum, vid, side="right"), C - 1).astype(jnp.int32)
    tile = (first_tile[g] + (vid - vstart[g])).astype(jnp.int32)
    is_real = vid < total_real
    tile = jnp.where(is_real, tile, num_row_tiles - 1).astype(jnp.int32)
    r0 = tile * tz
    lo = jnp.where(is_real, jnp.clip(starts[g] - r0, 0, tz), 0).astype(jnp.int32)
    hi = jnp.where(is_real, jnp.clip(ends[g] - r0, 0, tz), 0).astype(jnp.int32)
    gid = jnp.where(is_real, g, C - 1).astype(jnp.int32)
    prev_tile = jnp.concatenate([jnp.full((1,), -1, jnp.int32), tile[:-1]])
    first = (tile != prev_tile).astype(jnp.int32)

    kernel = _make_visit_kernel(nseg, u, v, tz, coefficients, compute_dtype)
    cost = pl.CostEstimate(
        flops=2 * Z * u * nv,
        transcendentals=0,
        bytes_accessed=(x.size * x.dtype.itemsize
                        + w3.size * w3.dtype.itemsize
                        + Z * nv * jnp.dtype(out_dtype).itemsize),
    )

    return pl.pallas_call(
        kernel,
        out_shape=jax.ShapeDtypeStruct((Z, nv), out_dtype),
        grid_spec=pltpu.PrefetchScalarGridSpec(
            num_scalar_prefetch=5,
            grid=(num_visits,),
            in_specs=[
                pl.BlockSpec((tz, u), lambda s, gi, tl, lo, hi, fs: (tl[s], 0)),
                pl.BlockSpec((nseg, u, v), lambda s, gi, tl, lo, hi, fs: (gi[s], 0, 0)),
            ],
            out_specs=pl.BlockSpec((tz, nv), lambda s, gi, tl, lo, hi, fs: (tl[s], 0)),
        ),
        compiler_params=pltpu.CompilerParams(dimension_semantics=("arbitrary",)),
        cost_estimate=cost,
    )(gid, tile, lo, hi, first, x, w3)


# --------------------------------------------------------------------------- #
# Dispatcher
# --------------------------------------------------------------------------- #
def indexed_linear_pallas(x, weights, counts, *, num_segments, u, v, coefficients,
                          tz=512, out_dtype=None, compute_dtype=None,
                          w_resident_limit_bytes=4 * 1024 * 1024,
                          force_visit_path=False):
    """out[z, s*V:(s+1)*V] = coeff_s * x[z] @ W[g(z), s], contiguous row groups.

    x        : (Z, U) rows sorted by group id
    weights  : (C, num_segments*U*V) native layout (indexed buffer)
    counts   : (C,) int32 rows per group (sums to Z)
    """
    Z, U = x.shape
    assert U == u
    C = weights.shape[0]
    assert weights.shape[1] == num_segments * u * v
    assert counts.shape == (C,)
    if out_dtype is None:
        out_dtype = x.dtype
    coefficients = tuple(float(c) for c in coefficients)

    # Free (row-major) reshape: (C, NSEG*U*V) -> (C*NSEG, U, V).  No transpose, no
    # coefficient fold -> no extra HBM pass over the weight buffer.
    w3 = weights.reshape(C * num_segments, u, v)

    # Padded VMEM footprint estimate of the whole weight tensor (sublane/lane tiling).
    w_vmem_bytes = (C * num_segments * _round_up(u, 8) * _round_up(v, 128)
                    * w3.dtype.itemsize)
    use_resident = (not force_visit_path) and (w_vmem_bytes <= w_resident_limit_bytes)

    kwargs = dict(nseg=num_segments, u=u, v=v, tz=tz, coefficients=coefficients,
                  out_dtype=out_dtype, compute_dtype=compute_dtype)
    if use_resident:
        return _resident_path(x, w3, counts, **kwargs)
    return _visit_path(x, w3, counts, **kwargs)


# --------------------------------------------------------------------------- #
# JAX port of the module glue (segments, coefficients, output buffers)
# --------------------------------------------------------------------------- #
class IndexedLinear:
    """'uv,u,v' IndexedLinear: weight buffer (C, num_segments*u*v) indexed by group,
    feature buffer (Z, u).  All segments fused into one lane-dense pallas_call with
    per-segment coefficients applied in-kernel on the f32 accumulator."""

    def __init__(self, u, v, num_segments, coefficients, *, tz=512,
                 compute_dtype=None, w_resident_limit_bytes=4 * 1024 * 1024,
                 force_visit_path=False):
        self.u = u
        self.v = v
        self.num_segments = num_segments
        self.coefficients = tuple(float(c) for c in coefficients)
        self.tz = tz
        self.compute_dtype = compute_dtype
        self.w_resident_limit_bytes = w_resident_limit_bytes
        self.force_visit_path = force_visit_path

    def forward(self, input1, input2, out_shape, counts, out_dtype):
        out = indexed_linear_pallas(
            input2, input1, counts,
            num_segments=self.num_segments, u=self.u, v=self.v,
            coefficients=self.coefficients, tz=self.tz,
            out_dtype=out_dtype, compute_dtype=self.compute_dtype,
            w_resident_limit_bytes=self.w_resident_limit_bytes,
            force_visit_path=self.force_visit_path)
        return out.reshape(out_shape[0], -1)


class SegmentedPolynomialIndexedLinear:
    """Single-operation instantiation of the PyTorch module:
         inputs[0]: weights  (C, num_segments*U*V)  -- indexed buffer (group axis)
         inputs[1]: features (Z, U)                 -- batch buffer
         output[0]: (Z, num_segments*V)
       Canonicalized subscripts of the operation: 'uv,u,v'."""

    def __init__(self, num_groups, U, V, num_segments=2, coefficients=(1.0, 0.5),
                 tz=512, compute_dtype=None, force_visit_path=False):
        self.num_inputs = 2
        self.num_outputs = 1
        self.input_sizes = [num_segments * U * V, U]
        self.out_size = [num_segments * V]
        # torch reference zips outputs_dims with self.dtypes from the front:
        # output k follows inputs[self.dtypes[k]] dtype.
        self.dtypes = list(range(self.num_inputs)) + [0]
        self.b_outs = [0]
        self.input_inds = [[0, 1]]
        # 'uv,u,v': C index -> buffer 0 (indexed weights), Z index -> buffer 1 (batch)
        self.indexed_input = [True, False, None]
        self.tps = [IndexedLinear(U, V, num_segments, coefficients, tz=tz,
                                  compute_dtype=compute_dtype,
                                  force_visit_path=force_visit_path)]

    def __call__(self, inputs, input_indices, output_shapes, output_indices):
        inputs = list(inputs)
        for i, (x, size) in enumerate(zip(inputs, self.input_sizes)):
            if x.ndim == 0:
                raise ValueError(f"Input {i} has no dimensions")
            if x.shape[-1] != size:
                raise ValueError(f"Input {i} has shape {x.shape}, expected last dim {size}.")

        count_indices = {}
        for k, idx in input_indices.items():
            if not self.indexed_input[k]:
                inputs[k] = inputs[k][idx]
            else:
                try:
                    is_tracer = isinstance(idx, jax.core.Tracer)
                except AttributeError:
                    is_tracer = True
                if not is_tracer:
                    assert np.all(np.diff(np.asarray(idx)) >= 0), \
                        "indexed_linear requires sorted (contiguous-group) indices"
                count_indices[k] = jnp.bincount(
                    idx, length=inputs[k].shape[0]).astype(jnp.int32)

        out_indices = [None for _ in range(self.num_outputs)]
        for k, idx in output_indices.items():
            if not self.indexed_input[k + self.num_inputs]:
                out_indices[k] = idx
            else:
                out_indices[k] = jnp.bincount(
                    idx, length=output_shapes[k].shape[0]).astype(jnp.int32)

        batch_size = 1
        for k, x in enumerate(inputs):
            if not self.indexed_input[k]:
                size = x.shape[0]
                if size != 1:
                    assert batch_size in (1, size)
                    batch_size = size

        outputs_dims = [
            (batch_size, sz) if i not in output_shapes else (output_shapes[i].shape[0], sz)
            for i, sz in enumerate(self.out_size)
        ]
        out_dtypes = [inputs[self.dtypes[i]].dtype for i in range(self.num_outputs)]

        # accumulate op outputs directly -- no zeros-init + add HBM pass
        out_buffers = [None for _ in range(self.num_outputs)]
        for i, tp in enumerate(self.tps):
            b_out = self.b_outs[i]
            input_list = [inputs[j] for j in self.input_inds[i]]
            counts = count_indices[self.input_inds[i][0]]      # Cind = [0, 0]
            out = tp.forward(input_list[0], input_list[1], outputs_dims[b_out],
                             counts, out_dtypes[b_out])
            if out_indices[b_out] is not None:
                # TODO(synk): scatter_add output-indexed path not exercised by this
                # single-operation 'uv,u,v' instantiation.
                raise NotImplementedError("output_indices scatter path not implemented")
            if outputs_dims[b_out][0] == out.shape[0]:
                contrib = out
            elif outputs_dims[b_out][0] == 1:
                contrib = out.sum(axis=0, keepdims=True)
            else:
                raise ValueError("Input/output batch size mismatch")
            out_buffers[b_out] = contrib if out_buffers[b_out] is None \
                else out_buffers[b_out] + contrib

        return [
            jnp.zeros(d, dtype=dt) if b is None else b
            for b, d, dt in zip(out_buffers, outputs_dims, out_dtypes)
        ]


# --------------------------------------------------------------------------- #
# reference + demo
# --------------------------------------------------------------------------- #
def reference(W, X, idx, U, V, nseg, coeffs):
    C = W.shape[0]
    outs = []
    for s in range(nseg):
        Ws = W[:, s * U * V:(s + 1) * U * V].reshape(C, U, V)
        outs.append(coeffs[s] * jnp.einsum("zu,zuv->zv", X, Ws[idx]))
    return jnp.concatenate(outs, axis=-1)


if __name__ == "__main__":
    C, U, V, Z, NSEG = 4, 32, 64, 512, 2
    COEFFS = (1.0, 0.5)

    key = jax.random.PRNGKey(0)
    kw, kx, ki, kx2 = jax.random.split(key, 4)
    W = jax.random.normal(kw, (C, NSEG * U * V), dtype=jnp.float32)        # indexed weights
    X = jax.random.normal(kx, (Z, U), dtype=jnp.float32)                   # batch features
    idx = jnp.sort(jax.random.randint(ki, (Z,), 0, C)).astype(jnp.int32)   # sorted groups

    # 1) default path: whole weight tensor resident in VMEM, tz=512 (one row tile
    #    covering all 4 groups -> exercises the in-kernel multi-group loop).
    model = SegmentedPolynomialIndexedLinear(C, U, V, NSEG, COEFFS)
    out = jax.block_until_ready(model([W, X], {0: idx}, {}, {}))
    ref = reference(W, X, idx, U, V, NSEG, COEFFS)
    assert out[0].shape == (Z, NSEG * V)
    np.testing.assert_allclose(np.asarray(out[0]), np.asarray(ref), rtol=2e-5, atol=2e-5)

    # 2) ragged batch (Z not a multiple of tz), uneven groups incl. an empty group,
    #    small tile so several tiles straddle group boundaries.
    Z2 = 300
    idx2 = jnp.concatenate([
        jnp.full((50,), 0, jnp.int32),
        jnp.full((170,), 2, jnp.int32),
        jnp.full((80,), 3, jnp.int32),
    ])
    X2 = jax.random.normal(kx2, (Z2, U), dtype=jnp.float32)
    ref2 = reference(W, X2, idx2, U, V, NSEG, COEFFS)

    model_small_tile = SegmentedPolynomialIndexedLinear(C, U, V, NSEG, COEFFS, tz=128)
    out2 = jax.block_until_ready(model_small_tile([W, X2], {0: idx2}, {}, {}))
    np.testing.assert_allclose(np.asarray(out2[0]), np.asarray(ref2), rtol=2e-5, atol=2e-5)

    # 3) force the visit-based fallback (used when the weight tensor is too large for
    #    VMEM residency) on the same ragged problem.
    model_visit = SegmentedPolynomialIndexedLinear(C, U, V, NSEG, COEFFS, tz=128,
                                                   force_visit_path=True)
    out3 = jax.block_until_ready(model_visit([W, X2], {0: idx2}, {}, {}))
    np.testing.assert_allclose(np.asarray(out3[0]), np.asarray(ref2), rtol=2e-5, atol=2e-5)

    print("KERNEL_OK")
</pallas_src>

<mosaic_0001>
module attributes {stable_mosaic.version = 11 : i64} {
  func.func @kernel(%arg0: i32, %arg1: memref<1xi32, #tpu.memory_space<smem>>, %arg2: memref<1xi32, #tpu.memory_space<smem>>, %arg3: memref<4xi32, #tpu.memory_space<smem>>, %arg4: memref<4xi32, #tpu.memory_space<smem>>, %arg5: memref<512x32xf32, #tpu.memory_space<vmem>>, %arg6: memref<8x32x64xf32, #tpu.memory_space<vmem>>, %arg7: memref<512x128xf32, #tpu.memory_space<vmem>>) attributes {dimension_semantics = [#tpu.dimension_semantics<parallel>], iteration_bounds = array<i64: 1>, scalar_prefetch = 4 : i64, scratch_operands = 0 : i64, tpu.core_type = #tpu.core_type<tc>, window_params = [{transform_indices = @transform_0, window_bounds = array<i64: 512, 32>}, {pipeline_mode = #tpu.pipeline_mode<synchronous>, transform_indices = @transform_1, window_bounds = array<i64: 8, 32, 64>}, {transform_indices = @transform_2, window_bounds = array<i64: 512, 128>}]} {
    %c512_i32 = arith.constant 512 : i32
    %0 = arith.muli %arg0, %c512_i32 : i32
    %c0 = arith.constant 0 : index
    %c0_0 = arith.constant 0 : index
    %1 = vector.load %arg5[%c0, %c0_0] : memref<512x32xf32, #tpu.memory_space<vmem>>, vector<512x32xf32>
    %2 = tpu.iota {dimensions = array<i32: 0>} : vector<512x1xi32>
    %3 = vector.broadcast %0 : i32 to vector<512x1xi32>
    %4 = arith.addi %2, %3 : vector<512x1xi32>
    %cst = arith.constant 0.000000e+00 : f32
    %5 = vector.broadcast %cst : f32 to vector<512x128xf32>
    %c0_1 = arith.constant 0 : index
    %c0_2 = arith.constant 0 : index
    %6 = vector.load %arg7[%c0_1, %c0_2] : memref<512x128xf32, #tpu.memory_space<vmem>>, vector<512x128xf32>
    tpu.vector_store %arg7[%c0_1, %c0_2], %5 {strides = array<i32>} : memref<512x128xf32, #tpu.memory_space<vmem>>, vector<512x128xf32>,
    %7 = arith.index_cast %arg0 : i32 to index
    %8 = memref.load %arg1[%7] : memref<1xi32, #tpu.memory_space<smem>>
    %9 = arith.index_cast %arg0 : i32 to index
    %10 = memref.load %arg2[%9] : memref<1xi32, #tpu.memory_space<smem>>
    %11 = arith.subi %10, %8 : i32
    %c1_i32 = arith.constant 1 : i32
    %c1_i32_3 = arith.constant 1 : i32
    %12 = arith.subi %c1_i32, %c1_i32_3 : i32
    %13 = arith.addi %11, %12 : i32
    %c1_i32_4 = arith.constant 1 : i32
    %14 = arith.divsi %13, %c1_i32_4 : i32
    %c1_i32_5 = arith.constant 1 : i32
    %c0_i32 = arith.constant 0 : i32
    %15 = arith.subi %14, %c0_i32 : i32
    %16 = arith.addi %c0_i32, %15 : i32
    %c1_i32_6 = arith.constant 1 : i32
    scf.for %arg8 = %c0_i32 to %16 step %c1_i32_6  : i32 {
      %17 = arith.muli %arg8, %c1_i32_5 : i32
      %18 = arith.addi %8, %17 : i32
      %19 = arith.index_cast %18 : i32 to index
      %20 = memref.load %arg3[%19] : memref<4xi32, #tpu.memory_space<smem>>
      %21 = arith.index_cast %18 : i32 to index
      %22 = memref.load %arg4[%21] : memref<4xi32, #tpu.memory_space<smem>>
      %23 = vector.broadcast %20 : i32 to vector<512x1xi32>
      %24 = arith.cmpi sge, %4, %23 : vector<512x1xi32>
      %25 = vector.broadcast %22 : i32 to vector<512x1xi32>
      %26 = arith.cmpi slt, %4, %25 : vector<512x1xi32>
      %27 = arith.andi %24, %26 : vector<512x1xi1>
      %cst_7 = arith.constant 0.000000e+00 : f32
      %28 = vector.broadcast %cst_7 : f32 to vector<512x32xf32>
      %29 = vector.shape_cast %27 : vector<512x1xi1> to vector<512x1xi1>
      %30 = vector.broadcast %29 : vector<512x1xi1> to vector<512x32xi1>
      %31 = arith.select %30, %1, %28 : vector<512x32xi1>, vector<512x32xf32>
      %c2_i32 = arith.constant 2 : i32
      %32 = arith.muli %18, %c2_i32 : i32
      %c0_i32_8 = arith.constant 0 : i32
      %33 = arith.addi %32, %c0_i32_8 : i32
      %34 = arith.index_cast %33 : i32 to index
      %c0_9 = arith.constant 0 : index
      %c0_10 = arith.constant 0 : index
      %35 = vector.load %arg6[%34, %c0_9, %c0_10] : memref<8x32x64xf32, #tpu.memory_space<vmem>>, vector<1x32x64xf32>
      %36 = vector.shape_cast %35 : vector<1x32x64xf32> to vector<32x64xf32>
      %cst_11 = arith.constant dense<0.000000e+00> : vector<512x64xf32>
      %37 = tpu.matmul %31, %36, %cst_11 {dimension_numbers = #tpu.dot_dimension_numbers<[1], [0], [0], [1], [0, 0, 1, 1], [], []>} : vector<512x32xf32>, vector<32x64xf32>, vector<512x64xf32> -> vector<512x64xf32>
      %cst_12 = arith.constant 1.000000e+00 : f32
      %38 = vector.broadcast %cst_12 : f32 to vector<512x64xf32>
      %39 = arith.mulf %38, %37 : vector<512x64xf32>
      %c2_i32_13 = arith.constant 2 : i32
      %40 = arith.muli %18, %c2_i32_13 : i32
      %c1_i32_14 = arith.constant 1 : i32
      %41 = arith.addi %40, %c1_i32_14 : i32
      %42 = arith.index_cast %41 : i32 to index
      %c0_15 = arith.constant 0 : index
      %c0_16 = arith.constant 0 : index
      %43 = vector.load %arg6[%42, %c0_15, %c0_16] : memref<8x32x64xf32, #tpu.memory_space<vmem>>, vector<1x32x64xf32>
      %44 = vector.shape_cast %43 : vector<1x32x64xf32> to vector<32x64xf32>
      %cst_17 = arith.constant dense<0.000000e+00> : vector<512x64xf32>
      %45 = tpu.matmul %31, %44, %cst_17 {dimension_numbers = #tpu.dot_dimension_numbers<[1], [0], [0], [1], [0, 0, 1, 1], [], []>} : vector<512x32xf32>, vector<32x64xf32>, vector<512x64xf32> -> vector<512x64xf32>
      %cst_18 = arith.constant 5.000000e-01 : f32
      %46 = vector.broadcast %cst_18 : f32 to vector<512x64xf32>
      %47 = arith.mulf %46, %45 : vector<512x64xf32>
      %48 = tpu.concatenate %39, %47 in 1 : vector<512x64xf32>, vector<512x64xf32> -> vector<512x128xf32>
      %c0_19 = arith.constant 0 : index
      %c0_20 = arith.constant 0 : index
      %49 = vector.load %arg7[%c0_19, %c0_20] : memref<512x128xf32, #tpu.memory_space<vmem>>, vector<512x128xf32>
      %50 = arith.addf %49, %48 : vector<512x128xf32>
      %c0_21 = arith.constant 0 : index
      %c0_22 = arith.constant 0 : index
      %51 = vector.load %arg7[%c0_21, %c0_22] : memref<512x128xf32, #tpu.memory_space<vmem>>, vector<512x128xf32>
      tpu.vector_store %arg7[%c0_21, %c0_22], %50 {strides = array<i32>} : memref<512x128xf32, #tpu.memory_space<vmem>>, vector<512x128xf32>,
    }
    return
  }
  func.func @transform_0(%arg0: i32, %arg1: memref<1xi32, #tpu.memory_space<smem>>, %arg2: memref<1xi32, #tpu.memory_space<smem>>, %arg3: memref<4xi32, #tpu.memory_space<smem>>, %arg4: memref<4xi32, #tpu.memory_space<smem>>) -> (i32, i32) {
    %c0_i32 = arith.constant 0 : i32
    %c0_i32_0 = arith.constant 0 : i32
    return %arg0, %c0_i32 : i32, i32
  }
  func.func @transform_1(%arg0: i32, %arg1: memref<1xi32, #tpu.memory_space<smem>>, %arg2: memref<1xi32, #tpu.memory_space<smem>>, %arg3: memref<4xi32, #tpu.memory_space<smem>>, %arg4: memref<4xi32, #tpu.memory_space<smem>>) -> (i32, i32, i32) {
    %c0_i32 = arith.constant 0 : i32
    %c0_i32_0 = arith.constant 0 : i32
    %c0_i32_1 = arith.constant 0 : i32
    %c0_i32_2 = arith.constant 0 : i32
    return %c0_i32, %c0_i32_0, %c0_i32_1 : i32, i32, i32
  }
  func.func @transform_2(%arg0: i32, %arg1: memref<1xi32, #tpu.memory_space<smem>>, %arg2: memref<1xi32, #tpu.memory_space<smem>>, %arg3: memref<4xi32, #tpu.memory_space<smem>>, %arg4: memref<4xi32, #tpu.memory_space<smem>>) -> (i32, i32) {
    %c0_i32 = arith.constant 0 : i32
    %c0_i32_0 = arith.constant 0 : i32
    return %arg0, %c0_i32 : i32, i32
  }
}

</mosaic_0001>

<llo_original>
// kernel: tpu_custom_call.1
$region0: #{tpu_custom_call.1}
  #allocation0 [shape = 'u32[]', space=smem, size = 0x4, offset = 0x4, fixed_abs, tag = 'smem constant byte address 0x4 - core index']
  #allocation1 [shape = 'u32[144,128]{1,0:T(1,128)}', space=vmem, size = 0x12000, scoped, tag = 'internal scratch']
  #allocation2 [shape = 's32[1]{0}', space=sflag, size = 0x4, scoped, tag = 'scoped memory for tpu_custom_call.1']
  #allocation3 [shape = 's32[1]{0:T(128)S(6)}', space=smem, size = 0x200, scoped, tag = 'prefetched SMEM operand 0']
  #allocation4 [shape = 's32[1]{0:T(128)S(6)}', space=smem, size = 0x200, scoped, tag = 'prefetched SMEM operand 1']
  #allocation5 [shape = 'u8[512]{0}', space=smem, size = 0x200, scoped, tag = 'prefetched SMEM operand 2']
  #allocation6 [shape = 'u8[512]{0}', space=smem, size = 0x200, scoped, tag = 'prefetched SMEM operand 3']
  %s0 = inlined_call_operand.<no memory space> [shape: s32[1], index: 0, kind: input, shape index: {}]
  %s1 = inlined_call_operand.<no memory space> [shape: s32[1], index: 1, kind: input, shape index: {}]
  %s2 = inlined_call_operand.vmem [shape: s32[4], index: 2, kind: input, shape index: {}]
  %s3 = inlined_call_operand.vmem [shape: s32[4], index: 3, kind: input, shape index: {}]
  %s4 = inlined_call_operand.vmem [shape: f32[512,32], index: 4, kind: input, shape index: {}]
  %s5 = inlined_call_operand.vmem [shape: f32[8,32,64], index: 5, kind: input, shape index: {}]
  %s6 = inlined_call_operand.hbm [shape: f32[512,128], index: 6, kind: output, shape index: {}]
  %s7 = sld [smem:[#allocation0]]
  $region25: #{tpu_custom_call.1} parent=0
    _
  %s9 = ssub.s32 1, %s7
  %s10 = scalar_select 0, %s9, %s7
  %11 = sst [smem:[#allocation3]] %s0
  %12 = sst [smem:[#allocation4]] %s1
  %s13 = sshll.u32 %s2, 4
  %s14 = int_to_ptr.vmem [resolvable:$true] %s13
  %16 = dma.vmem_to_smem %s14, 16, [#allocation5], [#allocation2]
  %s17 = sshll.u32 %s3, 4
  %s18 = int_to_ptr.vmem [resolvable:$true] %s17
  %20 = dma.vmem_to_smem %s18, 16, [#allocation6], [#allocation2]
  %21 = dma.done [#allocation2], 32
  %22 = sfence
  $region1: #{tpu_custom_call.1} parent=0
    #allocation7 [shape = 'u8[262144]{0}', space=vmem, size = 0x40000, scoped, tag = 'output window, operand 0, single buffered']
    #allocation8 [shape = 's32[1]{0}', space=sflag, size = 0x4, scoped, tag = 'scoped memory for tpu_custom_call.1']
    %23 = vsyncpa [#allocation8], 0
    // Predicated region
    $region2: #{tpu_custom_call.1} parent=1 // pred_check
      _
    $region3: #{tpu_custom_call.1} parent=1 // pred_check_branch
      %25 = sbr.rel (0) target = $region5
    $region4: #{tpu_custom_call.1} parent=1 // pred_region
      _
    $region5: #{tpu_custom_call.1} parent=1 // pred_fallthru
      _
    // Predicated region
    $region6: #{tpu_custom_call.1} parent=1 // pred_check
      _
    $region7: #{tpu_custom_call.1} parent=1 // pred_check_branch
      %27 = sbr.rel (0) target = $region9
    $region8: #{tpu_custom_call.1} parent=1 // pred_region
      _
    $region9: #{tpu_custom_call.1} parent=1 // pred_fallthru
      _
    %s28 = smul.u32 0, 512
    %v29 = vld [vmem:[%s4] sm:$0xff]
    %v30 = vld [vmem:[%s4 + $0x8] sm:$0xff]
    %v31 = vld [vmem:[%s4 + $0x10] sm:$0xff]
    %v32 = vld [vmem:[%s4 + $0x18] sm:$0xff]
    %v33 = vld [vmem:[%s4 + $0x20] sm:$0xff]
    %v34 = vld [vmem:[%s4 + $0x28] sm:$0xff]
    %v35 = vld [vmem:[%s4 + $0x30] sm:$0xff]
    %v36 = vld [vmem:[%s4 + $0x38] sm:$0xff]
    %v37 = vld [vmem:[%s4 + $0x40] sm:$0xff]
    %v38 = vld [vmem:[%s4 + $0x48] sm:$0xff]
    %v39 = vld [vmem:[%s4 + $0x50] sm:$0xff]
    %v40 = vld [vmem:[%s4 + $0x58] sm:$0xff]
    %v41 = vld [vmem:[%s4 + $0x60] sm:$0xff]
    %v42 = vld [vmem:[%s4 + $0x68] sm:$0xff]
    %v43 = vld [vmem:[%s4 + $0x70] sm:$0xff]
    %v44 = vld [vmem:[%s4 + $0x78] sm:$0xff]
    %v45 = vld [vmem:[%s4 + $0x80] sm:$0xff]
    %v46 = vld [vmem:[%s4 + $0x88] sm:$0xff]
    %v47 = vld [vmem:[%s4 + $0x90] sm:$0xff]
    %v48 = vld [vmem:[%s4 + $0x98] sm:$0xff]
    %v49 = vld [vmem:[%s4 + $0xa0] sm:$0xff]
    %v50 = vld [vmem:[%s4 + $0xa8] sm:$0xff]
    %v51 = vld [vmem:[%s4 + $0xb0] sm:$0xff]
    %v52 = vld [vmem:[%s4 + $0xb8] sm:$0xff]
    %v53 = vld [vmem:[%s4 + $0xc0] sm:$0xff]
    %v54 = vld [vmem:[%s4 + $0xc8] sm:$0xff]
    %v55 = vld [vmem:[%s4 + $0xd0] sm:$0xff]
    %v56 = vld [vmem:[%s4 + $0xd8] sm:$0xff]
    %v57 = vld [vmem:[%s4 + $0xe0] sm:$0xff]
    %v58 = vld [vmem:[%s4 + $0xe8] sm:$0xff]
    %v59 = vld [vmem:[%s4 + $0xf0] sm:$0xff]
    %v60 = vld [vmem:[%s4 + $0xf8] sm:$0xff]
    %v61 = vld [vmem:[%s4 + $0x100] sm:$0xff]
    %v62 = vld [vmem:[%s4 + $0x108] sm:$0xff]
    %v63 = vld [vmem:[%s4 + $0x110] sm:$0xff]
    %v64 = vld [vmem:[%s4 + $0x118] sm:$0xff]
    %v65 = vld [vmem:[%s4 + $0x120] sm:$0xff]
    %v66 = vld [vmem:[%s4 + $0x128] sm:$0xff]
    %v67 = vld [vmem:[%s4 + $0x130] sm:$0xff]
    %v68 = vld [vmem:[%s4 + $0x138] sm:$0xff]
    %v69 = vld [vmem:[%s4 + $0x140] sm:$0xff]
    %v70 = vld [vmem:[%s4 + $0x148] sm:$0xff]
    %v71 = vld [vmem:[%s4 + $0x150] sm:$0xff]
    %v72 = vld [vmem:[%s4 + $0x158] sm:$0xff]
    %v73 = vld [vmem:[%s4 + $0x160] sm:$0xff]
    %v74 = vld [vmem:[%s4 + $0x168] sm:$0xff]
    %v75 = vld [vmem:[%s4 + $0x170] sm:$0xff]
    %v76 = vld [vmem:[%s4 + $0x178] sm:$0xff]
    %v77 = vld [vmem:[%s4 + $0x180] sm:$0xff]
    %v78 = vld [vmem:[%s4 + $0x188] sm:$0xff]
    %v79 = vld [vmem:[%s4 + $0x190] sm:$0xff]
    %v80 = vld [vmem:[%s4 + $0x198] sm:$0xff]
    %v81 = vld [vmem:[%s4 + $0x1a0] sm:$0xff]
    %v82 = vld [vmem:[%s4 + $0x1a8] sm:$0xff]
    %v83 = vld [vmem:[%s4 + $0x1b0] sm:$0xff]
    %v84 = vld [vmem:[%s4 + $0x1b8] sm:$0xff]
    %v85 = vld [vmem:[%s4 + $0x1c0] sm:$0xff]
    %v86 = vld [vmem:[%s4 + $0x1c8] sm:$0xff]
    %v87 = vld [vmem:[%s4 + $0x1d0] sm:$0xff]
    %v88 = vld [vmem:[%s4 + $0x1d8] sm:$0xff]
    %v89 = vld [vmem:[%s4 + $0x1e0] sm:$0xff]
    %v90 = vld [vmem:[%s4 + $0x1e8] sm:$0xff]
    %v91 = vld [vmem:[%s4 + $0x1f0] sm:$0xff]
    %v92 = vld [vmem:[%s4 + $0x1f8] sm:$0xff]
    %v93 = vlaneseq
    %v94 = vshrl.u32 %v93, 7
    %v95 = vadd.s32 %v94, 8
    %v96 = vadd.s32 %v94, 16
    %v97 = vadd.s32 %v94, 24
    %v98 = vadd.s32 %v94, 32
    %v99 = vadd.s32 %v94, 40
    %v100 = vadd.s32 %v94, 48
    %v101 = vadd.s32 %v94, 56
    %v102 = vadd.s32 %v94, 64
    %v103 = vadd.s32 %v94, 72
    %v104 = vadd.s32 %v94, 80
    %v105 = vadd.s32 %v94, 88
    %v106 = vadd.s32 %v94, 96
    %v107 = vadd.s32 %v94, 104
    %v108 = vadd.s32 %v94, 112
    %v109 = vadd.s32 %v94, 120
    %v110 = vadd.s32 %v94, 128
    %v111 = vadd.s32 %v94, 136
    %v112 = vadd.s32 %v94, 144
    %v113 = vadd.s32 %v94, 152
    %v114 = vadd.s32 %v94, 160
    %v115 = vadd.s32 %v94, 168
    %v116 = vadd.s32 %v94, 176
    %v117 = vadd.s32 %v94, 184
    %v118 = vadd.s32 %v94, 192
    %v119 = vadd.s32 %v94, 200
    %v120 = vadd.s32 %v94, 208
    %v121 = vadd.s32 %v94, 216
    %v122 = vadd.s32 %v94, 224
    %v123 = vadd.s32 %v94, 232
    %v124 = vadd.s32 %v94, 240
    %v125 = vadd.s32 %v94, 248
    %v126 = vadd.s32 %v94, 256
    %v127 = vadd.s32 %v94, 264
    %v128 = vadd.s32 %v94, 272
    %v129 = vadd.s32 %v94, 280
    %v130 = vadd.s32 %v94, 288
    %v131 = vadd.s32 %v94, 296
    %v132 = vadd.s32 %v94, 304
    %v133 = vadd.s32 %v94, 312
    %v134 = vadd.s32 %v94, 320
    %v135 = vadd.s32 %v94, 328
    %v136 = vadd.s32 %v94, 336
    %v137 = vadd.s32 %v94, 344
    %v138 = vadd.s32 %v94, 352
    %v139 = vadd.s32 %v94, 360
    %v140 = vadd.s32 %v94, 368
    %v141 = vadd.s32 %v94, 376
    %v142 = vadd.s32 %v94, 384
    %v143 = vadd.s32 %v94, 392
    %v144 = vadd.s32 %v94, 400
    %v145 = vadd.s32 %v94, 408
    %v146 = vadd.s32 %v94, 416
    %v147 = vadd.s32 %v94, 424
    %v148 = vadd.s32 %v94, 432
    %v149 = vadd.s32 %v94, 440
    %v150 = vadd.s32 %v94, 448
    %v151 = vadd.s32 %v94, 456
    %v152 = vadd.s32 %v94, 464
    %v153 = vadd.s32 %v94, 472
    %v154 = vadd.s32 %v94, 480
    %v155 = vadd.s32 %v94, 488
    %v156 = vadd.s32 %v94, 496
    %v157 = vadd.s32 %v94, 504
    %v158 = vstv %s28
    %v159 = vadd.s32 %v94, %v158
    %v160 = vadd.s32 %v95, %v158
    %v161 = vadd.s32 %v96, %v158
    %v162 = vadd.s32 %v97, %v158
    %v163 = vadd.s32 %v98, %v158
    %v164 = vadd.s32 %v99, %v158
    %v165 = vadd.s32 %v100, %v158
    %v166 = vadd.s32 %v101, %v158
    %v167 = vadd.s32 %v102, %v158
    %v168 = vadd.s32 %v103, %v158
    %v169 = vadd.s32 %v104, %v158
    %v170 = vadd.s32 %v105, %v158
    %v171 = vadd.s32 %v106, %v158
    %v172 = vadd.s32 %v107, %v158
    %v173 = vadd.s32 %v108, %v158
    %v174 = vadd.s32 %v109, %v158
    %v175 = vadd.s32 %v110, %v158
    %v176 = vadd.s32 %v111, %v158
    %v177 = vadd.s32 %v112, %v158
    %v178 = vadd.s32 %v113, %v158
    %v179 = vadd.s32 %v114, %v158
    %v180 = vadd.s32 %v115, %v158
    %v181 = vadd.s32 %v116, %v158
    %v182 = vadd.s32 %v117, %v158
    %v183 = vadd.s32 %v118, %v158
    %v184 = vadd.s32 %v119, %v158
    %v185 = vadd.s32 %v120, %v158
    %v186 = vadd.s32 %v121, %v158
    %v187 = vadd.s32 %v122, %v158
    %v188 = vadd.s32 %v123, %v158
    %v189 = vadd.s32 %v124, %v158
    %v190 = vadd.s32 %v125, %v158
    %v191 = vadd.s32 %v126, %v158
    %v192 = vadd.s32 %v127, %v158
    %v193 = vadd.s32 %v128, %v158
    %v194 = vadd.s32 %v129, %v158
    %v195 = vadd.s32 %v130, %v158
    %v196 = vadd.s32 %v131, %v158
    %v197 = vadd.s32 %v132, %v158
    %v198 = vadd.s32 %v133, %v158
    %v199 = vadd.s32 %v134, %v158
    %v200 = vadd.s32 %v135, %v158
    %v201 = vadd.s32 %v136, %v158
    %v202 = vadd.s32 %v137, %v158
    %v203 = vadd.s32 %v138, %v158
    %v204 = vadd.s32 %v139, %v158
    %v205 = vadd.s32 %v140, %v158
    %v206 = vadd.s32 %v141, %v158
    %v207 = vadd.s32 %v142, %v158
    %v208 = vadd.s32 %v143, %v158
    %v209 = vadd.s32 %v144, %v158
    %v210 = vadd.s32 %v145, %v158
    %v211 = vadd.s32 %v146, %v158
    %v212 = vadd.s32 %v147, %v158
    %v213 = vadd.s32 %v148, %v158
    %v214 = vadd.s32 %v149, %v158
    %v215 = vadd.s32 %v150, %v158
    %v216 = vadd.s32 %v151, %v158
    %v217 = vadd.s32 %v152, %v158
    %v218 = vadd.s32 %v153, %v158
    %v219 = vadd.s32 %v154, %v158
    %v220 = vadd.s32 %v155, %v158
    %v221 = vadd.s32 %v156, %v158
    %v222 = vadd.s32 %v157, %v158
    %223 = vst [vmem:[#allocation7] sm:$0xff] 0.0
    %224 = vst [vmem:[#allocation7 + $0x8] sm:$0xff] 0.0
    %225 = vst [vmem:[#allocation7 + $0x10] sm:$0xff] 0.0
    %226 = vst [vmem:[#allocation7 + $0x18] sm:$0xff] 0.0
    %227 = vst [vmem:[#allocation7 + $0x20] sm:$0xff] 0.0
    %228 = vst [vmem:[#allocation7 + $0x28] sm:$0xff] 0.0
    %229 = vst [vmem:[#allocation7 + $0x30] sm:$0xff] 0.0
    %230 = vst [vmem:[#allocation7 + $0x38] sm:$0xff] 0.0
    %231 = vst [vmem:[#allocation7 + $0x40] sm:$0xff] 0.0
    %232 = vst [vmem:[#allocation7 + $0x48] sm:$0xff] 0.0
    %233 = vst [vmem:[#allocation7 + $0x50] sm:$0xff] 0.0
    %234 = vst [vmem:[#allocation7 + $0x58] sm:$0xff] 0.0
    %235 = vst [vmem:[#allocation7 + $0x60] sm:$0xff] 0.0
    %236 = vst [vmem:[#allocation7 + $0x68] sm:$0xff] 0.0
    %237 = vst [vmem:[#allocation7 + $0x70] sm:$0xff] 0.0
    %238 = vst [vmem:[#allocation7 + $0x78] sm:$0xff] 0.0
    %239 = vst [vmem:[#allocation7 + $0x80] sm:$0xff] 0.0
    %240 = vst [vmem:[#allocation7 + $0x88] sm:$0xff] 0.0
    %241 = vst [vmem:[#allocation7 + $0x90] sm:$0xff] 0.0
    %242 = vst [vmem:[#allocation7 + $0x98] sm:$0xff] 0.0
    %243 = vst [vmem:[#allocation7 + $0xa0] sm:$0xff] 0.0
    %244 = vst [vmem:[#allocation7 + $0xa8] sm:$0xff] 0.0
    %245 = vst [vmem:[#allocation7 + $0xb0] sm:$0xff] 0.0
    %246 = vst [vmem:[#allocation7 + $0xb8] sm:$0xff] 0.0
    %247 = vst [vmem:[#allocation7 + $0xc0] sm:$0xff] 0.0
    %248 = vst [vmem:[#allocation7 + $0xc8] sm:$0xff] 0.0
    %249 = vst [vmem:[#allocation7 + $0xd0] sm:$0xff] 0.0
    %250 = vst [vmem:[#allocation7 + $0xd8] sm:$0xff] 0.0
    %251 = vst [vmem:[#allocation7 + $0xe0] sm:$0xff] 0.0
    %252 = vst [vmem:[#allocation7 + $0xe8] sm:$0xff] 0.0
    %253 = vst [vmem:[#allocation7 + $0xf0] sm:$0xff] 0.0
    %254 = vst [vmem:[#allocation7 + $0xf8] sm:$0xff] 0.0
    %255 = vst [vmem:[#allocation7 + $0x100] sm:$0xff] 0.0
    %256 = vst [vmem:[#allocation7 + $0x108] sm:$0xff] 0.0
    %257 = vst [vmem:[#allocation7 + $0x110] sm:$0xff] 0.0
    %258 = vst [vmem:[#allocation7 + $0x118] sm:$0xff] 0.0
    %259 = vst [vmem:[#allocation7 + $0x120] sm:$0xff] 0.0
    %260 = vst [vmem:[#allocation7 + $0x128] sm:$0xff] 0.0
    %261 = vst [vmem:[#allocation7 + $0x130] sm:$0xff] 0.0
    %262 = vst [vmem:[#allocation7 + $0x138] sm:$0xff] 0.0
    %263 = vst [vmem:[#allocation7 + $0x140] sm:$0xff] 0.0
    %264 = vst [vmem:[#allocation7 + $0x148] sm:$0xff] 0.0
    %265 = vst [vmem:[#allocation7 + $0x150] sm:$0xff] 0.0
    %266 = vst [vmem:[#allocation7 + $0x158] sm:$0xff] 0.0
    %267 = vst [vmem:[#allocation7 + $0x160] sm:$0xff] 0.0
    %268 = vst [vmem:[#allocation7 + $0x168] sm:$0xff] 0.0
    %269 = vst [vmem:[#allocation7 + $0x170] sm:$0xff] 0.0
    %270 = vst [vmem:[#allocation7 + $0x178] sm:$0xff] 0.0
    %271 = vst [vmem:[#allocation7 + $0x180] sm:$0xff] 0.0
    %272 = vst [vmem:[#allocation7 + $0x188] sm:$0xff] 0.0
    %273 = vst [vmem:[#allocation7 + $0x190] sm:$0xff] 0.0
    %274 = vst [vmem:[#allocation7 + $0x198] sm:$0xff] 0.0
    %275 = vst [vmem:[#allocation7 + $0x1a0] sm:$0xff] 0.0
    %276 = vst [vmem:[#allocation7 + $0x1a8] sm:$0xff] 0.0
    %277 = vst [vmem:[#allocation7 + $0x1b0] sm:$0xff] 0.0
    %278 = vst [vmem:[#allocation7 + $0x1b8] sm:$0xff] 0.0
    %279 = vst [vmem:[#allocation7 + $0x1c0] sm:$0xff] 0.0
    %280 = vst [vmem:[#allocation7 + $0x1c8] sm:$0xff] 0.0
    %281 = vst [vmem:[#allocation7 + $0x1d0] sm:$0xff] 0.0
    %282 = vst [vmem:[#allocation7 + $0x1d8] sm:$0xff] 0.0
    %283 = vst [vmem:[#allocation7 + $0x1e0] sm:$0xff] 0.0
    %284 = vst [vmem:[#allocation7 + $0x1e8] sm:$0xff] 0.0
    %285 = vst [vmem:[#allocation7 + $0x1f0] sm:$0xff] 0.0
    %286 = vst [vmem:[#allocation7 + $0x1f8] sm:$0xff] 0.0
    %s287 = sld [smem:[#allocation3]]
    %s288 = sld [smem:[#allocation4]]
    %s289 = ssub.s32 %s288, %s287
    // While loop
    $region10: #{tpu_custom_call.1} parent=1 // loop_pre_header
      _
    $region11: #{tpu_custom_call.1} parent=1 // loop_header
      %s291 = sphi 0, %s293
      %p292 = scmp.ge.s32.totalorder %s291, %s289
    $region12: #{tpu_custom_call.1} parent=1 // loop_header_branch
      %295 = sbr.rel (%p292) target = $region16
    $region13: #{tpu_custom_call.1} parent=1 // loop_body
      %s296 = sadd.s32 %s287, %s291
      %s297 = sld [smem:[#allocation5 + %s296]]
      %s298 = sld [smem:[#allocation6 + %s296]]
      %v299 = vstv %s297
      %vm300 = vcmp.ge.s32.totalorder %v159, %v299
      %vm301 = vcmp.ge.s32.totalorder %v160, %v299
      %vm302 = vcmp.ge.s32.totalorder %v161, %v299
      %vm303 = vcmp.ge.s32.totalorder %v162, %v299
      %vm304 = vcmp.ge.s32.totalorder %v163, %v299
      %vm305 = vcmp.ge.s32.totalorder %v164, %v299
      %vm306 = vcmp.ge.s32.totalorder %v165, %v299
      %vm307 = vcmp.ge.s32.totalorder %v166, %v299
      %vm308 = vcmp.ge.s32.totalorder %v167, %v299
      %vm309 = vcmp.ge.s32.totalorder %v168, %v299
      %vm310 = vcmp.ge.s32.totalorder %v169, %v299
      %vm311 = vcmp.ge.s32.totalorder %v170, %v299
      %vm312 = vcmp.ge.s32.totalorder %v171, %v299
      %vm313 = vcmp.ge.s32.totalorder %v172, %v299
      %vm314 = vcmp.ge.s32.totalorder %v173, %v299
      %vm315 = vcmp.ge.s32.totalorder %v174, %v299
      %vm316 = vcmp.ge.s32.totalorder %v175, %v299
      %vm317 = vcmp.ge.s32.totalorder %v176, %v299
      %vm318 = vcmp.ge.s32.totalorder %v177, %v299
      %vm319 = vcmp.ge.s32.totalorder %v178, %v299
      %vm320 = vcmp.ge.s32.totalorder %v179, %v299
      %vm321 = vcmp.ge.s32.totalorder %v180, %v299
      %vm322 = vcmp.ge.s32.totalorder %v181, %v299
      %vm323 = vcmp.ge.s32.totalorder %v182, %v299
      %vm324 = vcmp.ge.s32.totalorder %v183, %v299
      %vm325 = vcmp.ge.s32.totalorder %v184, %v299
      %vm326 = vcmp.ge.s32.totalorder %v185, %v299
      %vm327 = vcmp.ge.s32.totalorder %v186, %v299
      %vm328 = vcmp.ge.s32.totalorder %v187, %v299
      %vm329 = vcmp.ge.s32.totalorder %v188, %v299
      %vm330 = vcmp.ge.s32.totalorder %v189, %v299
      %vm331 = vcmp.ge.s32.totalorder %v190, %v299
      %vm332 = vcmp.ge.s32.totalorder %v191, %v299
      %vm333 = vcmp.ge.s32.totalorder %v192, %v299
      %vm334 = vcmp.ge.s32.totalorder %v193, %v299
      %vm335 = vcmp.ge.s32.totalorder %v194, %v299
      %vm336 = vcmp.ge.s32.totalorder %v195, %v299
      %vm337 = vcmp.ge.s32.totalorder %v196, %v299
      %vm338 = vcmp.ge.s32.totalorder %v197, %v299
      %vm339 = vcmp.ge.s32.totalorder %v198, %v299
      %vm340 = vcmp.ge.s32.totalorder %v199, %v299
      %vm341 = vcmp.ge.s32.totalorder %v200, %v299
      %vm342 = vcmp.ge.s32.totalorder %v201, %v299
      %vm343 = vcmp.ge.s32.totalorder %v202, %v299
      %vm344 = vcmp.ge.s32.totalorder %v203, %v299
      %vm345 = vcmp.ge.s32.totalorder %v204, %v299
      %vm346 = vcmp.ge.s32.totalorder %v205, %v299
      %vm347 = vcmp.ge.s32.totalorder %v206, %v299
      %vm348 = vcmp.ge.s32.totalorder %v207, %v299
      %vm349 = vcmp.ge.s32.totalorder %v208, %v299
      %vm350 = vcmp.ge.s32.totalorder %v209, %v299
      %vm351 = vcmp.ge.s32.totalorder %v210, %v299
      %vm352 = vcmp.ge.s32.totalorder %v211, %v299
      %vm353 = vcmp.ge.s32.totalorder %v212, %v299
      %vm354 = vcmp.ge.s32.totalorder %v213, %v299
      %vm355 = vcmp.ge.s32.totalorder %v214, %v299
      %vm356 = vcmp.ge.s32.totalorder %v215, %v299
      %vm357 = vcmp.ge.s32.totalorder %v216, %v299
      %vm358 = vcmp.ge.s32.totalorder %v217, %v299
      %vm359 = vcmp.ge.s32.totalorder %v218, %v299
      %vm360 = vcmp.ge.s32.totalorder %v219, %v299
      %vm361 = vcmp.ge.s32.totalorder %v220, %v299
      %vm362 = vcmp.ge.s32.totalorder %v221, %v299
      %vm363 = vcmp.ge.s32.totalorder %v222, %v299
      %v364 = vstv %s298
      %vm365 = vcmp.lt.s32.totalorder %v159, %v364
      %vm366 = vcmp.lt.s32.totalorder %v160, %v364
      %vm367 = vcmp.lt.s32.totalorder %v161, %v364
      %vm368 = vcmp.lt.s32.totalorder %v162, %v364
      %vm369 = vcmp.lt.s32.totalorder %v163, %v364
      %vm370 = vcmp.lt.s32.totalorder %v164, %v364
      %vm371 = vcmp.lt.s32.totalorder %v165, %v364
      %vm372 = vcmp.lt.s32.totalorder %v166, %v364
      %vm373 = vcmp.lt.s32.totalorder %v167, %v364
      %vm374 = vcmp.lt.s32.totalorder %v168, %v364
      %vm375 = vcmp.lt.s32.totalorder %v169, %v364
      %vm376 = vcmp.lt.s32.totalorder %v170, %v364
      %vm377 = vcmp.lt.s32.totalorder %v171, %v364
      %vm378 = vcmp.lt.s32.totalorder %v172, %v364
      %vm379 = vcmp.lt.s32.totalorder %v173, %v364
      %vm380 = vcmp.lt.s32.totalorder %v174, %v364
      %vm381 = vcmp.lt.s32.totalorder %v175, %v364
      %vm382 = vcmp.lt.s32.totalorder %v176, %v364
      %vm383 = vcmp.lt.s32.totalorder %v177, %v364
      %vm384 = vcmp.lt.s32.totalorder %v178, %v364
      %vm385 = vcmp.lt.s32.totalorder %v179, %v364
      %vm386 = vcmp.lt.s32.totalorder %v180, %v364
      %vm387 = vcmp.lt.s32.totalorder %v181, %v364
      %vm388 = vcmp.lt.s32.totalorder %v182, %v364
      %vm389 = vcmp.lt.s32.totalorder %v183, %v364
      %vm390 = vcmp.lt.s32.totalorder %v184, %v364
      %vm391 = vcmp.lt.s32.totalorder %v185, %v364
      %vm392 = vcmp.lt.s32.totalorder %v186, %v364
      %vm393 = vcmp.lt.s32.totalorder %v187, %v364
      %vm394 = vcmp.lt.s32.totalorder %v188, %v364
      %vm395 = vcmp.lt.s32.totalorder %v189, %v364
      %vm396 = vcmp.lt.s32.totalorder %v190, %v364
      %vm397 = vcmp.lt.s32.totalorder %v191, %v364
      %vm398 = vcmp.lt.s32.totalorder %v192, %v364
      %vm399 = vcmp.lt.s32.totalorder %v193, %v364
      %vm400 = vcmp.lt.s32.totalorder %v194, %v364
      %vm401 = vcmp.lt.s32.totalorder %v195, %v364
      %vm402 = vcmp.lt.s32.totalorder %v196, %v364
      %vm403 = vcmp.lt.s32.totalorder %v197, %v364
      %vm404 = vcmp.lt.s32.totalorder %v198, %v364
      %vm405 = vcmp.lt.s32.totalorder %v199, %v364
      %vm406 = vcmp.lt.s32.totalorder %v200, %v364
      %vm407 = vcmp.lt.s32.totalorder %v201, %v364
      %vm408 = vcmp.lt.s32.totalorder %v202, %v364
      %vm409 = vcmp.lt.s32.totalorder %v203, %v364
      %vm410 = vcmp.lt.s32.totalorder %v204, %v364
      %vm411 = vcmp.lt.s32.totalorder %v205, %v364
      %vm412 = vcmp.lt.s32.totalorder %v206, %v364
      %vm413 = vcmp.lt.s32.totalorder %v207, %v364
      %vm414 = vcmp.lt.s32.totalorder %v208, %v364
      %vm415 = vcmp.lt.s32.totalorder %v209, %v364
      %vm416 = vcmp.lt.s32.totalorder %v210, %v364
      %vm417 = vcmp.lt.s32.totalorder %v211, %v364
      %vm418 = vcmp.lt.s32.totalorder %v212, %v364
      %vm419 = vcmp.lt.s32.totalorder %v213, %v364
      %vm420 = vcmp.lt.s32.totalorder %v214, %v364
      %vm421 = vcmp.lt.s32.totalorder %v215, %v364
      %vm422 = vcmp.lt.s32.totalorder %v216, %v364
      %vm423 = vcmp.lt.s32.totalorder %v217, %v364
      %vm424 = vcmp.lt.s32.totalorder %v218, %v364
      %vm425 = vcmp.lt.s32.totalorder %v219, %v364
      %vm426 = vcmp.lt.s32.totalorder %v220, %v364
      %vm427 = vcmp.lt.s32.totalorder %v221, %v364
      %vm428 = vcmp.lt.s32.totalorder %v222, %v364
      %vm429 = vmand %vm300, %vm365
      %vm430 = vmand %vm301, %vm366
      %vm431 = vmand %vm302, %vm367
      %vm432 = vmand %vm303, %vm368
      %vm433 = vmand %vm304, %vm369
      %vm434 = vmand %vm305, %vm370
      %vm435 = vmand %vm306, %vm371
      %vm436 = vmand %vm307, %vm372
      %vm437 = vmand %vm308, %vm373
      %vm438 = vmand %vm309, %vm374
      %vm439 = vmand %vm310, %vm375
      %vm440 = vmand %vm311, %vm376
      %vm441 = vmand %vm312, %vm377
      %vm442 = vmand %vm313, %vm378
      %vm443 = vmand %vm314, %vm379
      %vm444 = vmand %vm315, %vm380
      %vm445 = vmand %vm316, %vm381
      %vm446 = vmand %vm317, %vm382
      %vm447 = vmand %vm318, %vm383
      %vm448 = vmand %vm319, %vm384
      %vm449 = vmand %vm320, %vm385
      %vm450 = vmand %vm321, %vm386
      %vm451 = vmand %vm322, %vm387
      %vm452 = vmand %vm323, %vm388
      %vm453 = vmand %vm324, %vm389
      %vm454 = vmand %vm325, %vm390
      %vm455 = vmand %vm326, %vm391
      %vm456 = vmand %vm327, %vm392
      %vm457 = vmand %vm328, %vm393
      %vm458 = vmand %vm329, %vm394
      %vm459 = vmand %vm330, %vm395
      %vm460 = vmand %vm331, %vm396
      %vm461 = vmand %vm332, %vm397
      %vm462 = vmand %vm333, %vm398
      %vm463 = vmand %vm334, %vm399
      %vm464 = vmand %vm335, %vm400
      %vm465 = vmand %vm336, %vm401
      %vm466 = vmand %vm337, %vm402
      %vm467 = vmand %vm338, %vm403
      %vm468 = vmand %vm339, %vm404
      %vm469 = vmand %vm340, %vm405
      %vm470 = vmand %vm341, %vm406
      %vm471 = vmand %vm342, %vm407
      %vm472 = vmand %vm343, %vm408
      %vm473 = vmand %vm344, %vm409
      %vm474 = vmand %vm345, %vm410
      %vm475 = vmand %vm346, %vm411
      %vm476 = vmand %vm347, %vm412
      %vm477 = vmand %vm348, %vm413
      %vm478 = vmand %vm349, %vm414
      %vm479 = vmand %vm350, %vm415
      %vm480 = vmand %vm351, %vm416
      %vm481 = vmand %vm352, %vm417
      %vm482 = vmand %vm353, %vm418
      %vm483 = vmand %vm354, %vm419
      %vm484 = vmand %vm355, %vm420
      %vm485 = vmand %vm356, %vm421
      %vm486 = vmand %vm357, %vm422
      %vm487 = vmand %vm358, %vm423
      %vm488 = vmand %vm359, %vm424
      %vm489 = vmand %vm360, %vm425
      %vm490 = vmand %vm361, %vm426
      %vm491 = vmand %vm362, %vm427
      %vm492 = vmand %vm363, %vm428
      %v493 = vsel %vm429, 1, 0
      %v494 = vsel %vm430, 1, 0
      %v495 = vsel %vm431, 1, 0
      %v496 = vsel %vm432, 1, 0
      %v497 = vsel %vm433, 1, 0
      %v498 = vsel %vm434, 1, 0
      %v499 = vsel %vm435, 1, 0
      %v500 = vsel %vm436, 1, 0
      %v501 = vsel %vm437, 1, 0
      %v502 = vsel %vm438, 1, 0
      %v503 = vsel %vm439, 1, 0
      %v504 = vsel %vm440, 1, 0
      %v505 = vsel %vm441, 1, 0
      %v506 = vsel %vm442, 1, 0
      %v507 = vsel %vm443, 1, 0
      %v508 = vsel %vm444, 1, 0
      %v509 = vsel %vm445, 1, 0
      %v510 = vsel %vm446, 1, 0
      %v511 = vsel %vm447, 1, 0
      %v512 = vsel %vm448, 1, 0
      %v513 = vsel %vm449, 1, 0
      %v514 = vsel %vm450, 1, 0
      %v515 = vsel %vm451, 1, 0
      %v516 = vsel %vm452, 1, 0
      %v517 = vsel %vm453, 1, 0
      %v518 = vsel %vm454, 1, 0
      %v519 = vsel %vm455, 1, 0
      %v520 = vsel %vm456, 1, 0
      %v521 = vsel %vm457, 1, 0
      %v522 = vsel %vm458, 1, 0
      %v523 = vsel %vm459, 1, 0
      %v524 = vsel %vm460, 1, 0
      %v525 = vsel %vm461, 1, 0
      %v526 = vsel %vm462, 1, 0
      %v527 = vsel %vm463, 1, 0
      %v528 = vsel %vm464, 1, 0
      %v529 = vsel %vm465, 1, 0
      %v530 = vsel %vm466, 1, 0
      %v531 = vsel %vm467, 1, 0
      %v532 = vsel %vm468, 1, 0
      %v533 = vsel %vm469, 1, 0
      %v534 = vsel %vm470, 1, 0
      %v535 = vsel %vm471, 1, 0
      %v536 = vsel %vm472, 1, 0
      %v537 = vsel %vm473, 1, 0
      %v538 = vsel %vm474, 1, 0
      %v539 = vsel %vm475, 1, 0
      %v540 = vsel %vm476, 1, 0
      %v541 = vsel %vm477, 1, 0
      %v542 = vsel %vm478, 1, 0
      %v543 = vsel %vm479, 1, 0
      %v544 = vsel %vm480, 1, 0
      %v545 = vsel %vm481, 1, 0
      %v546 = vsel %vm482, 1, 0
      %v547 = vsel %vm483, 1, 0
      %v548 = vsel %vm484, 1, 0
      %v549 = vsel %vm485, 1, 0
      %v550 = vsel %vm486, 1, 0
      %v551 = vsel %vm487, 1, 0
      %v552 = vsel %vm488, 1, 0
      %v553 = vsel %vm489, 1, 0
      %v554 = vsel %vm490, 1, 0
      %v555 = vsel %vm491, 1, 0
      %v556 = vsel %vm492, 1, 0
      %vm557 = vcmp.eq.s32.totalorder %v493, 1
      %vm558 = vcmp.eq.s32.totalorder %v494, 1
      %vm559 = vcmp.eq.s32.totalorder %v495, 1
      %vm560 = vcmp.eq.s32.totalorder %v496, 1
      %vm561 = vcmp.eq.s32.totalorder %v497, 1
      %vm562 = vcmp.eq.s32.totalorder %v498, 1
      %vm563 = vcmp.eq.s32.totalorder %v499, 1
      %vm564 = vcmp.eq.s32.totalorder %v500, 1
      %vm565 = vcmp.eq.s32.totalorder %v501, 1
      %vm566 = vcmp.eq.s32.totalorder %v502, 1
      %vm567 = vcmp.eq.s32.totalorder %v503, 1
      %vm568 = vcmp.eq.s32.totalorder %v504, 1
      %vm569 = vcmp.eq.s32.totalorder %v505, 1
      %vm570 = vcmp.eq.s32.totalorder %v506, 1
      %vm571 = vcmp.eq.s32.totalorder %v507, 1
      %vm572 = vcmp.eq.s32.totalorder %v508, 1
      %vm573 = vcmp.eq.s32.totalorder %v509, 1
      %vm574 = vcmp.eq.s32.totalorder %v510, 1
      %vm575 = vcmp.eq.s32.totalorder %v511, 1
      %vm576 = vcmp.eq.s32.totalorder %v512, 1
      %vm577 = vcmp.eq.s32.totalorder %v513, 1
      %vm578 = vcmp.eq.s32.totalorder %v514, 1
      %vm579 = vcmp.eq.s32.totalorder %v515, 1
      %vm580 = vcmp.eq.s32.totalorder %v516, 1
      %vm581 = vcmp.eq.s32.totalorder %v517, 1
      %vm582 = vcmp.eq.s32.totalorder %v518, 1
      %vm583 = vcmp.eq.s32.totalorder %v519, 1
      %vm584 = vcmp.eq.s32.totalorder %v520, 1
      %vm585 = vcmp.eq.s32.totalorder %v521, 1
      %vm586 = vcmp.eq.s32.totalorder %v522, 1
      %vm587 = vcmp.eq.s32.totalorder %v523, 1
      %vm588 = vcmp.eq.s32.totalorder %v524, 1
      %vm589 = vcmp.eq.s32.totalorder %v525, 1
      %vm590 = vcmp.eq.s32.totalorder %v526, 1
      %vm591 = vcmp.eq.s32.totalorder %v527, 1
      %vm592 = vcmp.eq.s32.totalorder %v528, 1
      %vm593 = vcmp.eq.s32.totalorder %v529, 1
      %vm594 = vcmp.eq.s32.totalorder %v530, 1
      %vm595 = vcmp.eq.s32.totalorder %v531, 1
      %vm596 = vcmp.eq.s32.totalorder %v532, 1
      %vm597 = vcmp.eq.s32.totalorder %v533, 1
      %vm598 = vcmp.eq.s32.totalorder %v534, 1
      %vm599 = vcmp.eq.s32.totalorder %v535, 1
      %vm600 = vcmp.eq.s32.totalorder %v536, 1
      %vm601 = vcmp.eq.s32.totalorder %v537, 1
      %vm602 = vcmp.eq.s32.totalorder %v538, 1
      %vm603 = vcmp.eq.s32.totalorder %v539, 1
      %vm604 = vcmp.eq.s32.totalorder %v540, 1
      %vm605 = vcmp.eq.s32.totalorder %v541, 1
      %vm606 = vcmp.eq.s32.totalorder %v542, 1
      %vm607 = vcmp.eq.s32.totalorder %v543, 1
      %vm608 = vcmp.eq.s32.totalorder %v544, 1
      %vm609 = vcmp.eq.s32.totalorder %v545, 1
      %vm610 = vcmp.eq.s32.totalorder %v546, 1
      %vm611 = vcmp.eq.s32.totalorder %v547, 1
      %vm612 = vcmp.eq.s32.totalorder %v548, 1
      %vm613 = vcmp.eq.s32.totalorder %v549, 1
      %vm614 = vcmp.eq.s32.totalorder %v550, 1
      %vm615 = vcmp.eq.s32.totalorder %v551, 1
      %vm616 = vcmp.eq.s32.totalorder %v552, 1
      %vm617 = vcmp.eq.s32.totalorder %v553, 1
      %vm618 = vcmp.eq.s32.totalorder %v554, 1
      %vm619 = vcmp.eq.s32.totalorder %v555, 1
      %vm620 = vcmp.eq.s32.totalorder %v556, 1
      %v621 = vsel %vm557, %v29, 0.0
      %v622 = vsel %vm558, %v30, 0.0
      %v623 = vsel %vm559, %v31, 0.0
      %v624 = vsel %vm560, %v32, 0.0
      %v625 = vsel %vm561, %v33, 0.0
      %v626 = vsel %vm562, %v34, 0.0
      %v627 = vsel %vm563, %v35, 0.0
      %v628 = vsel %vm564, %v36, 0.0
      %v629 = vsel %vm565, %v37, 0.0
      %v630 = vsel %vm566, %v38, 0.0
      %v631 = vsel %vm567, %v39, 0.0
      %v632 = vsel %vm568, %v40, 0.0
      %v633 = vsel %vm569, %v41, 0.0
      %v634 = vsel %vm570, %v42, 0.0
      %v635 = vsel %vm571, %v43, 0.0
      %v636 = vsel %vm572, %v44, 0.0
      %v637 = vsel %vm573, %v45, 0.0
      %v638 = vsel %vm574, %v46, 0.0
      %v639 = vsel %vm575, %v47, 0.0
      %v640 = vsel %vm576, %v48, 0.0
      %v641 = vsel %vm577, %v49, 0.0
      %v642 = vsel %vm578, %v50, 0.0
      %v643 = vsel %vm579, %v51, 0.0
      %v644 = vsel %vm580, %v52, 0.0
      %v645 = vsel %vm581, %v53, 0.0
      %v646 = vsel %vm582, %v54, 0.0
      %v647 = vsel %vm583, %v55, 0.0
      %v648 = vsel %vm584, %v56, 0.0
      %v649 = vsel %vm585, %v57, 0.0
      %v650 = vsel %vm586, %v58, 0.0
      %v651 = vsel %vm587, %v59, 0.0
      %v652 = vsel %vm588, %v60, 0.0
      %v653 = vsel %vm589, %v61, 0.0
      %v654 = vsel %vm590, %v62, 0.0
      %v655 = vsel %vm591, %v63, 0.0
      %v656 = vsel %vm592, %v64, 0.0
      %v657 = vsel %vm593, %v65, 0.0
      %v658 = vsel %vm594, %v66, 0.0
      %v659 = vsel %vm595, %v67, 0.0
      %v660 = vsel %vm596, %v68, 0.0
      %v661 = vsel %vm597, %v69, 0.0
      %v662 = vsel %vm598, %v70, 0.0
      %v663 = vsel %vm599, %v71, 0.0
      %v664 = vsel %vm600, %v72, 0.0
      %v665 = vsel %vm601, %v73, 0.0
      %v666 = vsel %vm602, %v74, 0.0
      %v667 = vsel %vm603, %v75, 0.0
      %v668 = vsel %vm604, %v76, 0.0
      %v669 = vsel %vm605, %v77, 0.0
      %v670 = vsel %vm606, %v78, 0.0
      %v671 = vsel %vm607, %v79, 0.0
      %v672 = vsel %vm608, %v80, 0.0
      %v673 = vsel %vm609, %v81, 0.0
      %v674 = vsel %vm610, %v82, 0.0
      %v675 = vsel %vm611, %v83, 0.0
      %v676 = vsel %vm612, %v84, 0.0
      %v677 = vsel %vm613, %v85, 0.0
      %v678 = vsel %vm614, %v86, 0.0
      %v679 = vsel %vm615, %v87, 0.0
      %v680 = vsel %vm616, %v88, 0.0
      %v681 = vsel %vm617, %v89, 0.0
      %v682 = vsel %vm618, %v90, 0.0
      %v683 = vsel %vm619, %v91, 0.0
      %v684 = vsel %vm620, %v92, 0.0
      %s685 = smul.u32 %s296, 2
      %s686 = smul.u32 %s685, 32
      %s687 = scalar_lea.vmem %s5, %s686
      %v688 = vld [vmem:[%s687] sm:$0xff]
      %v689 = vld [vmem:[%s687 + $0x8] sm:$0xff]
      %v690 = vld [vmem:[%s687 + $0x10] sm:$0xff]
      %v691 = vld [vmem:[%s687 + $0x18] sm:$0xff]
      %vm692 = vcmask 261120
      %v694 = vsel %vm692, %v621, 0
      %v697 = vsel %vm692, %v622, 0
      %v700 = vsel %vm692, %v623, 0
      %v703 = vsel %vm692, %v624, 0
      %v706 = vsel %vm692, %v625, 0
      %v709 = vsel %vm692, %v626, 0
      %v712 = vsel %vm692, %v627, 0
      %v715 = vsel %vm692, %v628, 0
      %v718 = vsel %vm692, %v629, 0
      %v721 = vsel %vm692, %v630, 0
      %v724 = vsel %vm692, %v631, 0
      %v727 = vsel %vm692, %v632, 0
      %v730 = vsel %vm692, %v633, 0
      %v733 = vsel %vm692, %v634, 0
      %v736 = vsel %vm692, %v635, 0
      %v739 = vsel %vm692, %v636, 0
      %v742 = vsel %vm692, %v637, 0
      %v745 = vsel %vm692, %v638, 0
      %v748 = vsel %vm692, %v639, 0
      %v751 = vsel %vm692, %v640, 0
      %v754 = vsel %vm692, %v641, 0
      %v757 = vsel %vm692, %v642, 0
      %v760 = vsel %vm692, %v643, 0
      %v763 = vsel %vm692, %v644, 0
      %v766 = vsel %vm692, %v645, 0
      %v769 = vsel %vm692, %v646, 0
      %v772 = vsel %vm692, %v647, 0
      %v775 = vsel %vm692, %v648, 0
      %v778 = vsel %vm692, %v649, 0
      %v781 = vsel %vm692, %v650, 0
      %v784 = vsel %vm692, %v651, 0
      %v787 = vsel %vm692, %v652, 0
      %v790 = vsel %vm692, %v653, 0
      %v793 = vsel %vm692, %v654, 0
      %v796 = vsel %vm692, %v655, 0
      %v799 = vsel %vm692, %v656, 0
      %v802 = vsel %vm692, %v657, 0
      %v805 = vsel %vm692, %v658, 0
      %v808 = vsel %vm692, %v659, 0
      %v811 = vsel %vm692, %v660, 0
      %v814 = vsel %vm692, %v661, 0
      %v817 = vsel %vm692, %v662, 0
      %v820 = vsel %vm692, %v663, 0
      %v823 = vsel %vm692, %v664, 0
      %v826 = vsel %vm692, %v665, 0
      %v829 = vsel %vm692, %v666, 0
      %v832 = vsel %vm692, %v667, 0
      %v835 = vsel %vm692, %v668, 0
      %v838 = vsel %vm692, %v669, 0
      %v841 = vsel %vm692, %v670, 0
      %v844 = vsel %vm692, %v671, 0
      %v847 = vsel %vm692, %v672, 0
      %v850 = vsel %vm692, %v673, 0
      %v853 = vsel %vm692, %v674, 0
      %v856 = vsel %vm692, %v675, 0
      %v859 = vsel %vm692, %v676, 0
      %v862 = vsel %vm692, %v677, 0
      %v865 = vsel %vm692, %v678, 0
      %v868 = vsel %vm692, %v679, 0
      %v871 = vsel %vm692, %v680, 0
      %v874 = vsel %vm692, %v681, 0
      %v877 = vsel %vm692, %v682, 0
      %v880 = vsel %vm692, %v683, 0
      %v883 = vsel %vm692, %v684, 0
      %885 = vmatprep.subr.mxu0 0.0
      %886 = vmatpush1.msra.mxu0 0.0
      %887 = vmatprep.subr.mxu0 0.0
      %888 = vmatpush1.msra.mxu0 0.0
      %889 = vmatprep.subr.mxu0 0.0
      %890 = vmatpush1.msra.mxu0 0.0
      %891 = vmatprep.subr.mxu0 0.0
      %892 = vmatpush1.msra.mxu0 0.0
      %893 = vmatprep.subr.mxu0 0.0
      %894 = vmatpush1.msra.mxu0 0.0
      %895 = vmatprep.subr.mxu0 0.0
      %896 = vmatpush1.msra.mxu0 0.0
      %897 = vmatprep.subr.mxu0 0.0
      %898 = vmatpush1.msra.mxu0 0.0
      %899 = vmatprep.subr.mxu0 0.0
      %900 = vmatpush1.msra.mxu0 0.0
      %901 = vmatprep.subr.mxu0 0.0
      %902 = vmatpush1.msra.mxu0 0.0
      %903 = vmatprep.subr.mxu0 0.0
      %904 = vmatpush1.msra.mxu0 0.0
      %905 = vmatprep.subr.mxu0 0.0
      %906 = vmatpush1.msra.mxu0 0.0
      %907 = vmatprep.subr.mxu0 0.0
      %908 = vmatpush1.msra.mxu0 0.0
      %909 = vmatprep.subr.mxu0 0.0
      %910 = vmatpush1.msra.mxu0 %v691
      %911 = vmatprep.subr.mxu0 0.0
      %912 = vmatpush1.msra.mxu0 %v690
      %913 = vmatprep.subr.mxu0 0.0
      %914 = vmatpush1.msra.mxu0 %v689
      %915 = vmatprep.subr.mxu0 0.0
      %916 = vmatpush1.msra.mxu0 %v688
      %917 = vmatprep.subr.mxu0 0.0
      %918 = vmatpush2.msra.mxu0 0.0
      %919 = vmatprep.subr.mxu0 0.0
      %920 = vmatpush2.msra.mxu0 0.0
      %921 = vmatprep.subr.mxu0 0.0
      %922 = vmatpush2.msra.mxu0 0.0
      %923 = vmatprep.subr.mxu0 0.0
      %924 = vmatpush2.msra.mxu0 0.0
      %925 = vmatprep.subr.mxu0 0.0
      %926 = vmatpush2.msra.mxu0 0.0
      %927 = vmatprep.subr.mxu0 0.0
      %928 = vmatpush2.msra.mxu0 0.0
      %929 = vmatprep.subr.mxu0 0.0
      %930 = vmatpush2.msra.mxu0 0.0
      %931 = vmatprep.subr.mxu0 0.0
      %932 = vmatpush2.msra.mxu0 0.0
      %933 = vmatprep.subr.mxu0 0.0
      %934 = vmatpush2.msra.mxu0 0.0
      %935 = vmatprep.subr.mxu0 0.0
      %936 = vmatpush2.msra.mxu0 0.0
      %937 = vmatprep.subr.mxu0 0.0
      %938 = vmatpush2.msra.mxu0 0.0
      %939 = vmatprep.subr.mxu0 0.0
      %940 = vmatpush2.msra.mxu0 0.0
      %941 = vmatprep.subr.mxu0 0.0
      %942 = vmatpush2.msra.mxu0 0.0
      %943 = vmatprep.subr.mxu0 0.0
      %944 = vmatpush2.msra.mxu0 0.0
      %945 = vmatprep.subr.mxu0 0.0
      %946 = vmatpush2.msra.mxu0 0.0
      %947 = vmatprep.subr.mxu0 0.0
      %948 = vmatpush2.msra.mxu0 0.0
      %949 = vmatprep.mubr.f32.mxu0 0.0
      %950 = vmatmul.mubr.f32.gmra.mxu0 %v694
      %v951 = vpop.f32.mrf.mxu0
      %v952 = vadd.f32 0.0, %v951
      %v953 = vpop.f32.mrf.mxu0
      %954 = vmatprep.mubr.f32.mxu0 0.0
      %955 = vmatmul.mubr.f32.gmra.mxu0 %v697
      %v956 = vpop.f32.mrf.mxu0
      %v957 = vadd.f32 0.0, %v956
      %v958 = vpop.f32.mrf.mxu0
      %959 = vmatprep.mubr.f32.mxu0 0.0
      %960 = vmatmul.mubr.f32.gmra.mxu0 %v700
      %v961 = vpop.f32.mrf.mxu0
      %v962 = vadd.f32 0.0, %v961
      %v963 = vpop.f32.mrf.mxu0
      %964 = vmatprep.mubr.f32.mxu0 0.0
      %965 = vmatmul.mubr.f32.gmra.mxu0 %v703
      %v966 = vpop.f32.mrf.mxu0
      %v967 = vadd.f32 0.0, %v966
      %v968 = vpop.f32.mrf.mxu0
      %969 = vmatprep.mubr.f32.mxu0 0.0
      %970 = vmatmul.mubr.f32.gmra.mxu0 %v706
      %v971 = vpop.f32.mrf.mxu0
      %v972 = vadd.f32 0.0, %v971
      %v973 = vpop.f32.mrf.mxu0
      %974 = vmatprep.mubr.f32.mxu0 0.0
      %975 = vmatmul.mubr.f32.gmra.mxu0 %v709
      %v976 = vpop.f32.mrf.mxu0
      %v977 = vadd.f32 0.0, %v976
      %v978 = vpop.f32.mrf.mxu0
      %979 = vmatprep.mubr.f32.mxu0 0.0
      %980 = vmatmul.mubr.f32.gmra.mxu0 %v712
      %v981 = vpop.f32.mrf.mxu0
      %v982 = vadd.f32 0.0, %v981
      %v983 = vpop.f32.mrf.mxu0
      %984 = vmatprep.mubr.f32.mxu0 0.0
      %985 = vmatmul.mubr.f32.gmra.mxu0 %v715
      %v986 = vpop.f32.mrf.mxu0
      %v987 = vadd.f32 0.0, %v986
      %v988 = vpop.f32.mrf.mxu0
      %989 = vmatprep.mubr.f32.mxu0 0.0
      %990 = vmatmul.mubr.f32.gmra.mxu0 %v718
      %v991 = vpop.f32.mrf.mxu0
      %v992 = vadd.f32 0.0, %v991
      %v993 = vpop.f32.mrf.mxu0
      %994 = vmatprep.mubr.f32.mxu0 0.0
      %995 = vmatmul.mubr.f32.gmra.mxu0 %v721
      %v996 = vpop.f32.mrf.mxu0
      %v997 = vadd.f32 0.0, %v996
      %v998 = vpop.f32.mrf.mxu0
      %999 = vmatprep.mubr.f32.mxu0 0.0
      %1000 = vmatmul.mubr.f32.gmra.mxu0 %v724
      %v1001 = vpop.f32.mrf.mxu0
      %v1002 = vadd.f32 0.0, %v1001
      %v1003 = vpop.f32.mrf.mxu0
      %1004 = vmatprep.mubr.f32.mxu0 0.0
      %1005 = vmatmul.mubr.f32.gmra.mxu0 %v727
      %v1006 = vpop.f32.mrf.mxu0
      %v1007 = vadd.f32 0.0, %v1006
      %v1008 = vpop.f32.mrf.mxu0
      %1009 = vmatprep.mubr.f32.mxu0 0.0
      %1010 = vmatmul.mubr.f32.gmra.mxu0 %v730
      %v1011 = vpop.f32.mrf.mxu0
      %v1012 = vadd.f32 0.0, %v1011
      %v1013 = vpop.f32.mrf.mxu0
      %1014 = vmatprep.mubr.f32.mxu0 0.0
      %1015 = vmatmul.mubr.f32.gmra.mxu0 %v733
      %v1016 = vpop.f32.mrf.mxu0
      %v1017 = vadd.f32 0.0, %v1016
      %v1018 = vpop.f32.mrf.mxu0
      %1019 = vmatprep.mubr.f32.mxu0 0.0
      %1020 = vmatmul.mubr.f32.gmra.mxu0 %v736
      %v1021 = vpop.f32.mrf.mxu0
      %v1022 = vadd.f32 0.0, %v1021
      %v1023 = vpop.f32.mrf.mxu0
      %1024 = vmatprep.mubr.f32.mxu0 0.0
      %1025 = vmatmul.mubr.f32.gmra.mxu0 %v739
      %v1026 = vpop.f32.mrf.mxu0
      %v1027 = vadd.f32 0.0, %v1026
      %v1028 = vpop.f32.mrf.mxu0
      %1029 = vmatprep.mubr.f32.mxu0 0.0
      %1030 = vmatmul.mubr.f32.gmra.mxu0 %v742
      %v1031 = vpop.f32.mrf.mxu0
      %v1032 = vadd.f32 0.0, %v1031
      %v1033 = vpop.f32.mrf.mxu0
      %1034 = vmatprep.mubr.f32.mxu0 0.0
      %1035 = vmatmul.mubr.f32.gmra.mxu0 %v745
      %v1036 = vpop.f32.mrf.mxu0
      %v1037 = vadd.f32 0.0, %v1036
      %v1038 = vpop.f32.mrf.mxu0
      %1039 = vmatprep.mubr.f32.mxu0 0.0
      %1040 = vmatmul.mubr.f32.gmra.mxu0 %v748
      %v1041 = vpop.f32.mrf.mxu0
      %v1042 = vadd.f32 0.0, %v1041
      %v1043 = vpop.f32.mrf.mxu0
      %1044 = vmatprep.mubr.f32.mxu0 0.0
      %1045 = vmatmul.mubr.f32.gmra.mxu0 %v751
      %v1046 = vpop.f32.mrf.mxu0
      %v1047 = vadd.f32 0.0, %v1046
      %v1048 = vpop.f32.mrf.mxu0
      %1049 = vmatprep.mubr.f32.mxu0 0.0
      %1050 = vmatmul.mubr.f32.gmra.mxu0 %v754
      %v1051 = vpop.f32.mrf.mxu0
      %v1052 = vadd.f32 0.0, %v1051
      %v1053 = vpop.f32.mrf.mxu0
      %1054 = vmatprep.mubr.f32.mxu0 0.0
      %1055 = vmatmul.mubr.f32.gmra.mxu0 %v757
      %v1056 = vpop.f32.mrf.mxu0
      %v1057 = vadd.f32 0.0, %v1056
      %v1058 = vpop.f32.mrf.mxu0
      %1059 = vmatprep.mubr.f32.mxu0 0.0
      %1060 = vmatmul.mubr.f32.gmra.mxu0 %v760
      %v1061 = vpop.f32.mrf.mxu0
      %v1062 = vadd.f32 0.0, %v1061
      %v1063 = vpop.f32.mrf.mxu0
      %1064 = vmatprep.mubr.f32.mxu0 0.0
      %1065 = vmatmul.mubr.f32.gmra.mxu0 %v763
      %v1066 = vpop.f32.mrf.mxu0
      %v1067 = vadd.f32 0.0, %v1066
      %v1068 = vpop.f32.mrf.mxu0
      %1069 = vmatprep.mubr.f32.mxu0 0.0
      %1070 = vmatmul.mubr.f32.gmra.mxu0 %v766
      %v1071 = vpop.f32.mrf.mxu0
      %v1072 = vadd.f32 0.0, %v1071
      %v1073 = vpop.f32.mrf.mxu0
      %1074 = vmatprep.mubr.f32.mxu0 0.0
      %1075 = vmatmul.mubr.f32.gmra.mxu0 %v769
      %v1076 = vpop.f32.mrf.mxu0
      %v1077 = vadd.f32 0.0, %v1076
      %v1078 = vpop.f32.mrf.mxu0
      %1079 = vmatprep.mubr.f32.mxu0 0.0
      %1080 = vmatmul.mubr.f32.gmra.mxu0 %v772
      %v1081 = vpop.f32.mrf.mxu0
      %v1082 = vadd.f32 0.0, %v1081
      %v1083 = vpop.f32.mrf.mxu0
      %1084 = vmatprep.mubr.f32.mxu0 0.0
      %1085 = vmatmul.mubr.f32.gmra.mxu0 %v775
      %v1086 = vpop.f32.mrf.mxu0
      %v1087 = vadd.f32 0.0, %v1086
      %v1088 = vpop.f32.mrf.mxu0
      %1089 = vmatprep.mubr.f32.mxu0 0.0
      %1090 = vmatmul.mubr.f32.gmra.mxu0 %v778
      %v1091 = vpop.f32.mrf.mxu0
      %v1092 = vadd.f32 0.0, %v1091
      %v1093 = vpop.f32.mrf.mxu0
      %1094 = vmatprep.mubr.f32.mxu0 0.0
      %1095 = vmatmul.mubr.f32.gmra.mxu0 %v781
      %v1096 = vpop.f32.mrf.mxu0
      %v1097 = vadd.f32 0.0, %v1096
      %v1098 = vpop.f32.mrf.mxu0
      %1099 = vmatprep.mubr.f32.mxu0 0.0
      %1100 = vmatmul.mubr.f32.gmra.mxu0 %v784
      %v1101 = vpop.f32.mrf.mxu0
      %v1102 = vadd.f32 0.0, %v1101
      %v1103 = vpop.f32.mrf.mxu0
      %1104 = vmatprep.mubr.f32.mxu0 0.0
      %1105 = vmatmul.mubr.f32.gmra.mxu0 %v787
      %v1106 = vpop.f32.mrf.mxu0
      %v1107 = vadd.f32 0.0, %v1106
      %v1108 = vpop.f32.mrf.mxu0
      %1109 = vmatprep.mubr.f32.mxu0 0.0
      %1110 = vmatmul.mubr.f32.gmra.mxu0 %v790
      %v1111 = vpop.f32.mrf.mxu0
      %v1112 = vadd.f32 0.0, %v1111
      %v1113 = vpop.f32.mrf.mxu0
      %1114 = vmatprep.mubr.f32.mxu0 0.0
      %1115 = vmatmul.mubr.f32.gmra.mxu0 %v793
      %v1116 = vpop.f32.mrf.mxu0
      %v1117 = vadd.f32 0.0, %v1116
      %v1118 = vpop.f32.mrf.mxu0
      %1119 = vmatprep.mubr.f32.mxu0 0.0
      %1120 = vmatmul.mubr.f32.gmra.mxu0 %v796
      %v1121 = vpop.f32.mrf.mxu0
      %v1122 = vadd.f32 0.0, %v1121
      %v1123 = vpop.f32.mrf.mxu0
      %1124 = vmatprep.mubr.f32.mxu0 0.0
      %1125 = vmatmul.mubr.f32.gmra.mxu0 %v799
      %v1126 = vpop.f32.mrf.mxu0
      %v1127 = vadd.f32 0.0, %v1126
      %v1128 = vpop.f32.mrf.mxu0
      %1129 = vmatprep.mubr.f32.mxu0 0.0
      %1130 = vmatmul.mubr.f32.gmra.mxu0 %v802
      %v1131 = vpop.f32.mrf.mxu0
      %v1132 = vadd.f32 0.0, %v1131
      %v1133 = vpop.f32.mrf.mxu0
      %1134 = vmatprep.mubr.f32.mxu0 0.0
      %1135 = vmatmul.mubr.f32.gmra.mxu0 %v805
      %v1136 = vpop.f32.mrf.mxu0
      %v1137 = vadd.f32 0.0, %v1136
      %v1138 = vpop.f32.mrf.mxu0
      %1139 = vmatprep.mubr.f32.mxu0 0.0
      %1140 = vmatmul.mubr.f32.gmra.mxu0 %v808
      %v1141 = vpop.f32.mrf.mxu0
      %v1142 = vadd.f32 0.0, %v1141
      %v1143 = vpop.f32.mrf.mxu0
      %1144 = vmatprep.mubr.f32.mxu0 0.0
      %1145 = vmatmul.mubr.f32.gmra.mxu0 %v811
      %v1146 = vpop.f32.mrf.mxu0
      %v1147 = vadd.f32 0.0, %v1146
      %v1148 = vpop.f32.mrf.mxu0
      %1149 = vmatprep.mubr.f32.mxu0 0.0
      %1150 = vmatmul.mubr.f32.gmra.mxu0 %v814
      %v1151 = vpop.f32.mrf.mxu0
      %v1152 = vadd.f32 0.0, %v1151
      %v1153 = vpop.f32.mrf.mxu0
      %1154 = vmatprep.mubr.f32.mxu0 0.0
      %1155 = vmatmul.mubr.f32.gmra.mxu0 %v817
      %v1156 = vpop.f32.mrf.mxu0
      %v1157 = vadd.f32 0.0, %v1156
      %v1158 = vpop.f32.mrf.mxu0
      %1159 = vmatprep.mubr.f32.mxu0 0.0
      %1160 = vmatmul.mubr.f32.gmra.mxu0 %v820
      %v1161 = vpop.f32.mrf.mxu0
      %v1162 = vadd.f32 0.0, %v1161
      %v1163 = vpop.f32.mrf.mxu0
      %1164 = vmatprep.mubr.f32.mxu0 0.0
      %1165 = vmatmul.mubr.f32.gmra.mxu0 %v823
      %v1166 = vpop.f32.mrf.mxu0
      %v1167 = vadd.f32 0.0, %v1166
      %v1168 = vpop.f32.mrf.mxu0
      %1169 = vmatprep.mubr.f32.mxu0 0.0
      %1170 = vmatmul.mubr.f32.gmra.mxu0 %v826
      %v1171 = vpop.f32.mrf.mxu0
      %v1172 = vadd.f32 0.0, %v1171
      %v1173 = vpop.f32.mrf.mxu0
      %1174 = vmatprep.mubr.f32.mxu0 0.0
      %1175 = vmatmul.mubr.f32.gmra.mxu0 %v829
      %v1176 = vpop.f32.mrf.mxu0
      %v1177 = vadd.f32 0.0, %v1176
      %v1178 = vpop.f32.mrf.mxu0
      %1179 = vmatprep.mubr.f32.mxu0 0.0
      %1180 = vmatmul.mubr.f32.gmra.mxu0 %v832
      %v1181 = vpop.f32.mrf.mxu0
      %v1182 = vadd.f32 0.0, %v1181
      %v1183 = vpop.f32.mrf.mxu0
      %1184 = vmatprep.mubr.f32.mxu0 0.0
      %1185 = vmatmul.mubr.f32.gmra.mxu0 %v835
      %v1186 = vpop.f32.mrf.mxu0
      %v1187 = vadd.f32 0.0, %v1186
      %v1188 = vpop.f32.mrf.mxu0
      %1189 = vmatprep.mubr.f32.mxu0 0.0
      %1190 = vmatmul.mubr.f32.gmra.mxu0 %v838
      %v1191 = vpop.f32.mrf.mxu0
      %v1192 = vadd.f32 0.0, %v1191
      %v1193 = vpop.f32.mrf.mxu0
      %1194 = vmatprep.mubr.f32.mxu0 0.0
      %1195 = vmatmul.mubr.f32.gmra.mxu0 %v841
      %v1196 = vpop.f32.mrf.mxu0
      %v1197 = vadd.f32 0.0, %v1196
      %v1198 = vpop.f32.mrf.mxu0
      %1199 = vmatprep.mubr.f32.mxu0 0.0
      %1200 = vmatmul.mubr.f32.gmra.mxu0 %v844
      %v1201 = vpop.f32.mrf.mxu0
      %v1202 = vadd.f32 0.0, %v1201
      %v1203 = vpop.f32.mrf.mxu0
      %1204 = vmatprep.mubr.f32.mxu0 0.0
      %1205 = vmatmul.mubr.f32.gmra.mxu0 %v847
      %v1206 = vpop.f32.mrf.mxu0
      %v1207 = vadd.f32 0.0, %v1206
      %v1208 = vpop.f32.mrf.mxu0
      %1209 = vmatprep.mubr.f32.mxu0 0.0
      %1210 = vmatmul.mubr.f32.gmra.mxu0 %v850
      %v1211 = vpop.f32.mrf.mxu0
      %v1212 = vadd.f32 0.0, %v1211
      %v1213 = vpop.f32.mrf.mxu0
      %1214 = vmatprep.mubr.f32.mxu0 0.0
      %1215 = vmatmul.mubr.f32.gmra.mxu0 %v853
      %v1216 = vpop.f32.mrf.mxu0
      %v1217 = vadd.f32 0.0, %v1216
      %v1218 = vpop.f32.mrf.mxu0
      %1219 = vmatprep.mubr.f32.mxu0 0.0
      %1220 = vmatmul.mubr.f32.gmra.mxu0 %v856
      %v1221 = vpop.f32.mrf.mxu0
      %v1222 = vadd.f32 0.0, %v1221
      %v1223 = vpop.f32.mrf.mxu0
      %1224 = vmatprep.mubr.f32.mxu0 0.0
      %1225 = vmatmul.mubr.f32.gmra.mxu0 %v859
      %v1226 = vpop.f32.mrf.mxu0
      %v1227 = vadd.f32 0.0, %v1226
      %v1228 = vpop.f32.mrf.mxu0
      %1229 = vmatprep.mubr.f32.mxu0 0.0
      %1230 = vmatmul.mubr.f32.gmra.mxu0 %v862
      %v1231 = vpop.f32.mrf.mxu0
      %v1232 = vadd.f32 0.0, %v1231
      %v1233 = vpop.f32.mrf.mxu0
      %1234 = vmatprep.mubr.f32.mxu0 0.0
      %1235 = vmatmul.mubr.f32.gmra.mxu0 %v865
      %v1236 = vpop.f32.mrf.mxu0
      %v1237 = vadd.f32 0.0, %v1236
      %v1238 = vpop.f32.mrf.mxu0
      %1239 = vmatprep.mubr.f32.mxu0 0.0
      %1240 = vmatmul.mubr.f32.gmra.mxu0 %v868
      %v1241 = vpop.f32.mrf.mxu0
      %v1242 = vadd.f32 0.0, %v1241
      %v1243 = vpop.f32.mrf.mxu0
      %1244 = vmatprep.mubr.f32.mxu0 0.0
      %1245 = vmatmul.mubr.f32.gmra.mxu0 %v871
      %v1246 = vpop.f32.mrf.mxu0
      %v1247 = vadd.f32 0.0, %v1246
      %v1248 = vpop.f32.mrf.mxu0
      %1249 = vmatprep.mubr.f32.mxu0 0.0
      %1250 = vmatmul.mubr.f32.gmra.mxu0 %v874
      %v1251 = vpop.f32.mrf.mxu0
      %v1252 = vadd.f32 0.0, %v1251
      %v1253 = vpop.f32.mrf.mxu0
      %1254 = vmatprep.mubr.f32.mxu0 0.0
      %1255 = vmatmul.mubr.f32.gmra.mxu0 %v877
      %v1256 = vpop.f32.mrf.mxu0
      %v1257 = vadd.f32 0.0, %v1256
      %v1258 = vpop.f32.mrf.mxu0
      %1259 = vmatprep.mubr.f32.mxu0 0.0
      %1260 = vmatmul.mubr.f32.gmra.mxu0 %v880
      %v1261 = vpop.f32.mrf.mxu0
      %v1262 = vadd.f32 0.0, %v1261
      %v1263 = vpop.f32.mrf.mxu0
      %1264 = vmatprep.mubr.f32.mxu0 0.0
      %1265 = vmatmul.mubr.f32.gmra.mxu0 %v883
      %v1266 = vpop.f32.mrf.mxu0
      %v1267 = vadd.f32 0.0, %v1266
      %v1268 = vpop.f32.mrf.mxu0
      %1269 = vdwg.mxu0
      %s1270 = sadd.s32 %s685, 1
      %s1271 = smul.u32 %s1270, 32
      %s1272 = scalar_lea.vmem %s5, %s1271
      %v1273 = vld [vmem:[%s1272] sm:$0xff]
      %v1274 = vld [vmem:[%s1272 + $0x8] sm:$0xff]
      %v1275 = vld [vmem:[%s1272 + $0x10] sm:$0xff]
      %v1276 = vld [vmem:[%s1272 + $0x18] sm:$0xff]
      %1277 = vmatprep.subr.mxu0 0.0
      %1278 = vmatpush1.msra.mxu0 0.0
      %1279 = vmatprep.subr.mxu0 0.0
      %1280 = vmatpush1.msra.mxu0 0.0
      %1281 = vmatprep.subr.mxu0 0.0
      %1282 = vmatpush1.msra.mxu0 0.0
      %1283 = vmatprep.subr.mxu0 0.0
      %1284 = vmatpush1.msra.mxu0 0.0
      %1285 = vmatprep.subr.mxu0 0.0
      %1286 = vmatpush1.msra.mxu0 0.0
      %1287 = vmatprep.subr.mxu0 0.0
      %1288 = vmatpush1.msra.mxu0 0.0
      %1289 = vmatprep.subr.mxu0 0.0
      %1290 = vmatpush1.msra.mxu0 0.0
      %1291 = vmatprep.subr.mxu0 0.0
      %1292 = vmatpush1.msra.mxu0 0.0
      %1293 = vmatprep.subr.mxu0 0.0
      %1294 = vmatpush1.msra.mxu0 0.0
      %1295 = vmatprep.subr.mxu0 0.0
      %1296 = vmatpush1.msra.mxu0 0.0
      %1297 = vmatprep.subr.mxu0 0.0
      %1298 = vmatpush1.msra.mxu0 0.0
      %1299 = vmatprep.subr.mxu0 0.0
      %1300 = vmatpush1.msra.mxu0 0.0
      %1301 = vmatprep.subr.mxu0 0.0
      %1302 = vmatpush1.msra.mxu0 %v1276
      %1303 = vmatprep.subr.mxu0 0.0
      %1304 = vmatpush1.msra.mxu0 %v1275
      %1305 = vmatprep.subr.mxu0 0.0
      %1306 = vmatpush1.msra.mxu0 %v1274
      %1307 = vmatprep.subr.mxu0 0.0
      %1308 = vmatpush1.msra.mxu0 %v1273
      %1309 = vmatprep.subr.mxu0 0.0
      %1310 = vmatpush2.msra.mxu0 0.0
      %1311 = vmatprep.subr.mxu0 0.0
      %1312 = vmatpush2.msra.mxu0 0.0
      %1313 = vmatprep.subr.mxu0 0.0
      %1314 = vmatpush2.msra.mxu0 0.0
      %1315 = vmatprep.subr.mxu0 0.0
      %1316 = vmatpush2.msra.mxu0 0.0
      %1317 = vmatprep.subr.mxu0 0.0
      %1318 = vmatpush2.msra.mxu0 0.0
      %1319 = vmatprep.subr.mxu0 0.0
      %1320 = vmatpush2.msra.mxu0 0.0
      %1321 = vmatprep.subr.mxu0 0.0
      %1322 = vmatpush2.msra.mxu0 0.0
      %1323 = vmatprep.subr.mxu0 0.0
      %1324 = vmatpush2.msra.mxu0 0.0
      %1325 = vmatprep.subr.mxu0 0.0
      %1326 = vmatpush2.msra.mxu0 0.0
      %1327 = vmatprep.subr.mxu0 0.0
      %1328 = vmatpush2.msra.mxu0 0.0
      %1329 = vmatprep.subr.mxu0 0.0
      %1330 = vmatpush2.msra.mxu0 0.0
      %1331 = vmatprep.subr.mxu0 0.0
      %1332 = vmatpush2.msra.mxu0 0.0
      %1333 = vmatprep.subr.mxu0 0.0
      %1334 = vmatpush2.msra.mxu0 0.0
      %1335 = vmatprep.subr.mxu0 0.0
      %1336 = vmatpush2.msra.mxu0 0.0
      %1337 = vmatprep.subr.mxu0 0.0
      %1338 = vmatpush2.msra.mxu0 0.0
      %1339 = vmatprep.subr.mxu0 0.0
      %1340 = vmatpush2.msra.mxu0 0.0
      %1341 = vmatprep.mubr.f32.mxu0 0.0
      %1342 = vmatmul.mubr.f32.gmra.mxu0 %v694
      %v1343 = vpop.f32.mrf.mxu0
      %v1344 = vadd.f32 0.0, %v1343
      %v1345 = vpop.f32.mrf.mxu0
      %1346 = vmatprep.mubr.f32.mxu0 0.0
      %1347 = vmatmul.mubr.f32.gmra.mxu0 %v697
      %v1348 = vpop.f32.mrf.mxu0
      %v1349 = vadd.f32 0.0, %v1348
      %v1350 = vpop.f32.mrf.mxu0
      %1351 = vmatprep.mubr.f32.mxu0 0.0
      %1352 = vmatmul.mubr.f32.gmra.mxu0 %v700
      %v1353 = vpop.f32.mrf.mxu0
      %v1354 = vadd.f32 0.0, %v1353
      %v1355 = vpop.f32.mrf.mxu0
      %1356 = vmatprep.mubr.f32.mxu0 0.0
      %1357 = vmatmul.mubr.f32.gmra.mxu0 %v703
      %v1358 = vpop.f32.mrf.mxu0
      %v1359 = vadd.f32 0.0, %v1358
      %v1360 = vpop.f32.mrf.mxu0
      %1361 = vmatprep.mubr.f32.mxu0 0.0
      %1362 = vmatmul.mubr.f32.gmra.mxu0 %v706
      %v1363 = vpop.f32.mrf.mxu0
      %v1364 = vadd.f32 0.0, %v1363
      %v1365 = vpop.f32.mrf.mxu0
      %1366 = vmatprep.mubr.f32.mxu0 0.0
      %1367 = vmatmul.mubr.f32.gmra.mxu0 %v709
      %v1368 = vpop.f32.mrf.mxu0
      %v1369 = vadd.f32 0.0, %v1368
      %v1370 = vpop.f32.mrf.mxu0
      %1371 = vmatprep.mubr.f32.mxu0 0.0
      %1372 = vmatmul.mubr.f32.gmra.mxu0 %v712
      %v1373 = vpop.f32.mrf.mxu0
      %v1374 = vadd.f32 0.0, %v1373
      %v1375 = vpop.f32.mrf.mxu0
      %1376 = vmatprep.mubr.f32.mxu0 0.0
      %1377 = vmatmul.mubr.f32.gmra.mxu0 %v715
      %v1378 = vpop.f32.mrf.mxu0
      %v1379 = vadd.f32 0.0, %v1378
      %v1380 = vpop.f32.mrf.mxu0
      %1381 = vmatprep.mubr.f32.mxu0 0.0
      %1382 = vmatmul.mubr.f32.gmra.mxu0 %v718
      %v1383 = vpop.f32.mrf.mxu0
      %v1384 = vadd.f32 0.0, %v1383
      %v1385 = vpop.f32.mrf.mxu0
      %1386 = vmatprep.mubr.f32.mxu0 0.0
      %1387 = vmatmul.mubr.f32.gmra.mxu0 %v721
      %v1388 = vpop.f32.mrf.mxu0
      %v1389 = vadd.f32 0.0, %v1388
      %v1390 = vpop.f32.mrf.mxu0
      %1391 = vmatprep.mubr.f32.mxu0 0.0
      %1392 = vmatmul.mubr.f32.gmra.mxu0 %v724
      %v1393 = vpop.f32.mrf.mxu0
      %v1394 = vadd.f32 0.0, %v1393
      %v1395 = vpop.f32.mrf.mxu0
      %1396 = vmatprep.mubr.f32.mxu0 0.0
      %1397 = vmatmul.mubr.f32.gmra.mxu0 %v727
      %v1398 = vpop.f32.mrf.mxu0
      %v1399 = vadd.f32 0.0, %v1398
      %v1400 = vpop.f32.mrf.mxu0
      %1401 = vmatprep.mubr.f32.mxu0 0.0
      %1402 = vmatmul.mubr.f32.gmra.mxu0 %v730
      %v1403 = vpop.f32.mrf.mxu0
      %v1404 = vadd.f32 0.0, %v1403
      %v1405 = vpop.f32.mrf.mxu0
      %1406 = vmatprep.mubr.f32.mxu0 0.0
      %1407 = vmatmul.mubr.f32.gmra.mxu0 %v733
      %v1408 = vpop.f32.mrf.mxu0
      %v1409 = vadd.f32 0.0, %v1408
      %v1410 = vpop.f32.mrf.mxu0
      %1411 = vmatprep.mubr.f32.mxu0 0.0
      %1412 = vmatmul.mubr.f32.gmra.mxu0 %v736
      %v1413 = vpop.f32.mrf.mxu0
      %v1414 = vadd.f32 0.0, %v1413
      %v1415 = vpop.f32.mrf.mxu0
      %1416 = vmatprep.mubr.f32.mxu0 0.0
      %1417 = vmatmul.mubr.f32.gmra.mxu0 %v739
      %v1418 = vpop.f32.mrf.mxu0
      %v1419 = vadd.f32 0.0, %v1418
      %v1420 = vpop.f32.mrf.mxu0
      %1421 = vmatprep.mubr.f32.mxu0 0.0
      %1422 = vmatmul.mubr.f32.gmra.mxu0 %v742
      %v1423 = vpop.f32.mrf.mxu0
      %v1424 = vadd.f32 0.0, %v1423
      %v1425 = vpop.f32.mrf.mxu0
      %1426 = vmatprep.mubr.f32.mxu0 0.0
      %1427 = vmatmul.mubr.f32.gmra.mxu0 %v745
      %v1428 = vpop.f32.mrf.mxu0
      %v1429 = vadd.f32 0.0, %v1428
      %v1430 = vpop.f32.mrf.mxu0
      %1431 = vmatprep.mubr.f32.mxu0 0.0
      %1432 = vmatmul.mubr.f32.gmra.mxu0 %v748
      %v1433 = vpop.f32.mrf.mxu0
      %v1434 = vadd.f32 0.0, %v1433
      %v1435 = vpop.f32.mrf.mxu0
      %1436 = vmatprep.mubr.f32.mxu0 0.0
      %1437 = vmatmul.mubr.f32.gmra.mxu0 %v751
      %v1438 = vpop.f32.mrf.mxu0
      %v1439 = vadd.f32 0.0, %v1438
      %v1440 = vpop.f32.mrf.mxu0
      %1441 = vmatprep.mubr.f32.mxu0 0.0
      %1442 = vmatmul.mubr.f32.gmra.mxu0 %v754
      %v1443 = vpop.f32.mrf.mxu0
      %v1444 = vadd.f32 0.0, %v1443
      %v1445 = vpop.f32.mrf.mxu0
      %1446 = vmatprep.mubr.f32.mxu0 0.0
      %1447 = vmatmul.mubr.f32.gmra.mxu0 %v757
      %v1448 = vpop.f32.mrf.mxu0
      %v1449 = vadd.f32 0.0, %v1448
      %v1450 = vpop.f32.mrf.mxu0
      %1451 = vmatprep.mubr.f32.mxu0 0.0
      %1452 = vmatmul.mubr.f32.gmra.mxu0 %v760
      %v1453 = vpop.f32.mrf.mxu0
      %v1454 = vadd.f32 0.0, %v1453
      %v1455 = vpop.f32.mrf.mxu0
      %1456 = vmatprep.mubr.f32.mxu0 0.0
      %1457 = vmatmul.mubr.f32.gmra.mxu0 %v763
      %v1458 = vpop.f32.mrf.mxu0
      %v1459 = vadd.f32 0.0, %v1458
      %v1460 = vpop.f32.mrf.mxu0
      %1461 = vmatprep.mubr.f32.mxu0 0.0
      %1462 = vmatmul.mubr.f32.gmra.mxu0 %v766
      %v1463 = vpop.f32.mrf.mxu0
      %v1464 = vadd.f32 0.0, %v1463
      %v1465 = vpop.f32.mrf.mxu0
      %1466 = vmatprep.mubr.f32.mxu0 0.0
      %1467 = vmatmul.mubr.f32.gmra.mxu0 %v769
      %v1468 = vpop.f32.mrf.mxu0
      %v1469 = vadd.f32 0.0, %v1468
      %v1470 = vpop.f32.mrf.mxu0
      %1471 = vmatprep.mubr.f32.mxu0 0.0
      %1472 = vmatmul.mubr.f32.gmra.mxu0 %v772
      %v1473 = vpop.f32.mrf.mxu0
      %v1474 = vadd.f32 0.0, %v1473
      %v1475 = vpop.f32.mrf.mxu0
      %1476 = vmatprep.mubr.f32.mxu0 0.0
      %1477 = vmatmul.mubr.f32.gmra.mxu0 %v775
      %v1478 = vpop.f32.mrf.mxu0
      %v1479 = vadd.f32 0.0, %v1478
      %v1480 = vpop.f32.mrf.mxu0
      %1481 = vmatprep.mubr.f32.mxu0 0.0
      %1482 = vmatmul.mubr.f32.gmra.mxu0 %v778
      %v1483 = vpop.f32.mrf.mxu0
      %v1484 = vadd.f32 0.0, %v1483
      %v1485 = vpop.f32.mrf.mxu0
      %1486 = vmatprep.mubr.f32.mxu0 0.0
      %1487 = vmatmul.mubr.f32.gmra.mxu0 %v781
      %v1488 = vpop.f32.mrf.mxu0
      %v1489 = vadd.f32 0.0, %v1488
      %v1490 = vpop.f32.mrf.mxu0
      %1491 = vmatprep.mubr.f32.mxu0 0.0
      %1492 = vmatmul.mubr.f32.gmra.mxu0 %v784
      %v1493 = vpop.f32.mrf.mxu0
      %v1494 = vadd.f32 0.0, %v1493
      %v1495 = vpop.f32.mrf.mxu0
      %1496 = vmatprep.mubr.f32.mxu0 0.0
      %1497 = vmatmul.mubr.f32.gmra.mxu0 %v787
      %v1498 = vpop.f32.mrf.mxu0
      %v1499 = vadd.f32 0.0, %v1498
      %v1500 = vpop.f32.mrf.mxu0
      %1501 = vmatprep.mubr.f32.mxu0 0.0
      %1502 = vmatmul.mubr.f32.gmra.mxu0 %v790
      %v1503 = vpop.f32.mrf.mxu0
      %v1504 = vadd.f32 0.0, %v1503
      %v1505 = vpop.f32.mrf.mxu0
      %1506 = vmatprep.mubr.f32.mxu0 0.0
      %1507 = vmatmul.mubr.f32.gmra.mxu0 %v793
      %v1508 = vpop.f32.mrf.mxu0
      %v1509 = vadd.f32 0.0, %v1508
      %v1510 = vpop.f32.mrf.mxu0
      %1511 = vmatprep.mubr.f32.mxu0 0.0
      %1512 = vmatmul.mubr.f32.gmra.mxu0 %v796
      %v1513 = vpop.f32.mrf.mxu0
      %v1514 = vadd.f32 0.0, %v1513
      %v1515 = vpop.f32.mrf.mxu0
      %1516 = vmatprep.mubr.f32.mxu0 0.0
      %1517 = vmatmul.mubr.f32.gmra.mxu0 %v799
      %v1518 = vpop.f32.mrf.mxu0
      %v1519 = vadd.f32 0.0, %v1518
      %v1520 = vpop.f32.mrf.mxu0
      %1521 = vmatprep.mubr.f32.mxu0 0.0
      %1522 = vmatmul.mubr.f32.gmra.mxu0 %v802
      %v1523 = vpop.f32.mrf.mxu0
      %v1524 = vadd.f32 0.0, %v1523
      %v1525 = vpop.f32.mrf.mxu0
      %1526 = vmatprep.mubr.f32.mxu0 0.0
      %1527 = vmatmul.mubr.f32.gmra.mxu0 %v805
      %v1528 = vpop.f32.mrf.mxu0
      %v1529 = vadd.f32 0.0, %v1528
      %v1530 = vpop.f32.mrf.mxu0
      %1531 = vmatprep.mubr.f32.mxu0 0.0
      %1532 = vmatmul.mubr.f32.gmra.mxu0 %v808
      %v1533 = vpop.f32.mrf.mxu0
      %v1534 = vadd.f32 0.0, %v1533
      %v1535 = vpop.f32.mrf.mxu0
      %1536 = vmatprep.mubr.f32.mxu0 0.0
      %1537 = vmatmul.mubr.f32.gmra.mxu0 %v811
      %v1538 = vpop.f32.mrf.mxu0
      %v1539 = vadd.f32 0.0, %v1538
      %v1540 = vpop.f32.mrf.mxu0
      %1541 = vmatprep.mubr.f32.mxu0 0.0
      %1542 = vmatmul.mubr.f32.gmra.mxu0 %v814
      %v1543 = vpop.f32.mrf.mxu0
      %v1544 = vadd.f32 0.0, %v1543
      %v1545 = vpop.f32.mrf.mxu0
      %1546 = vmatprep.mubr.f32.mxu0 0.0
      %1547 = vmatmul.mubr.f32.gmra.mxu0 %v817
      %v1548 = vpop.f32.mrf.mxu0
      %v1549 = vadd.f32 0.0, %v1548
      %v1550 = vpop.f32.mrf.mxu0
      %1551 = vmatprep.mubr.f32.mxu0 0.0
      %1552 = vmatmul.mubr.f32.gmra.mxu0 %v820
      %v1553 = vpop.f32.mrf.mxu0
      %v1554 = vadd.f32 0.0, %v1553
      %v1555 = vpop.f32.mrf.mxu0
      %1556 = vmatprep.mubr.f32.mxu0 0.0
      %1557 = vmatmul.mubr.f32.gmra.mxu0 %v823
      %v1558 = vpop.f32.mrf.mxu0
      %v1559 = vadd.f32 0.0, %v1558
      %v1560 = vpop.f32.mrf.mxu0
      %1561 = vmatprep.mubr.f32.mxu0 0.0
      %1562 = vmatmul.mubr.f32.gmra.mxu0 %v826
      %v1563 = vpop.f32.mrf.mxu0
      %v1564 = vadd.f32 0.0, %v1563
      %v1565 = vpop.f32.mrf.mxu0
      %1566 = vmatprep.mubr.f32.mxu0 0.0
      %1567 = vmatmul.mubr.f32.gmra.mxu0 %v829
      %v1568 = vpop.f32.mrf.mxu0
      %v1569 = vadd.f32 0.0, %v1568
      %v1570 = vpop.f32.mrf.mxu0
      %1571 = vmatprep.mubr.f32.mxu0 0.0
      %1572 = vmatmul.mubr.f32.gmra.mxu0 %v832
      %v1573 = vpop.f32.mrf.mxu0
      %v1574 = vadd.f32 0.0, %v1573
      %v1575 = vpop.f32.mrf.mxu0
      %1576 = vmatprep.mubr.f32.mxu0 0.0
      %1577 = vmatmul.mubr.f32.gmra.mxu0 %v835
      %v1578 = vpop.f32.mrf.mxu0
      %v1579 = vadd.f32 0.0, %v1578
      %v1580 = vpop.f32.mrf.mxu0
      %1581 = vmatprep.mubr.f32.mxu0 0.0
      %1582 = vmatmul.mubr.f32.gmra.mxu0 %v838
      %v1583 = vpop.f32.mrf.mxu0
      %v1584 = vadd.f32 0.0, %v1583
      %v1585 = vpop.f32.mrf.mxu0
      %1586 = vmatprep.mubr.f32.mxu0 0.0
      %1587 = vmatmul.mubr.f32.gmra.mxu0 %v841
      %v1588 = vpop.f32.mrf.mxu0
      %v1589 = vadd.f32 0.0, %v1588
      %v1590 = vpop.f32.mrf.mxu0
      %1591 = vmatprep.mubr.f32.mxu0 0.0
      %1592 = vmatmul.mubr.f32.gmra.mxu0 %v844
      %v1593 = vpop.f32.mrf.mxu0
      %v1594 = vadd.f32 0.0, %v1593
      %v1595 = vpop.f32.mrf.mxu0
      %1596 = vmatprep.mubr.f32.mxu0 0.0
      %1597 = vmatmul.mubr.f32.gmra.mxu0 %v847
      %v1598 = vpop.f32.mrf.mxu0
      %v1599 = vadd.f32 0.0, %v1598
      %v1600 = vpop.f32.mrf.mxu0
      %1601 = vmatprep.mubr.f32.mxu0 0.0
      %1602 = vmatmul.mubr.f32.gmra.mxu0 %v850
      %v1603 = vpop.f32.mrf.mxu0
      %v1604 = vadd.f32 0.0, %v1603
      %v1605 = vpop.f32.mrf.mxu0
      %1606 = vmatprep.mubr.f32.mxu0 0.0
      %1607 = vmatmul.mubr.f32.gmra.mxu0 %v853
      %v1608 = vpop.f32.mrf.mxu0
      %v1609 = vadd.f32 0.0, %v1608
      %v1610 = vpop.f32.mrf.mxu0
      %1611 = vmatprep.mubr.f32.mxu0 0.0
      %1612 = vmatmul.mubr.f32.gmra.mxu0 %v856
      %v1613 = vpop.f32.mrf.mxu0
      %v1614 = vadd.f32 0.0, %v1613
      %v1615 = vpop.f32.mrf.mxu0
      %1616 = vmatprep.mubr.f32.mxu0 0.0
      %1617 = vmatmul.mubr.f32.gmra.mxu0 %v859
      %v1618 = vpop.f32.mrf.mxu0
      %v1619 = vadd.f32 0.0, %v1618
      %v1620 = vpop.f32.mrf.mxu0
      %1621 = vmatprep.mubr.f32.mxu0 0.0
      %1622 = vmatmul.mubr.f32.gmra.mxu0 %v862
      %v1623 = vpop.f32.mrf.mxu0
      %v1624 = vadd.f32 0.0, %v1623
      %v1625 = vpop.f32.mrf.mxu0
      %1626 = vmatprep.mubr.f32.mxu0 0.0
      %1627 = vmatmul.mubr.f32.gmra.mxu0 %v865
      %v1628 = vpop.f32.mrf.mxu0
      %v1629 = vadd.f32 0.0, %v1628
      %v1630 = vpop.f32.mrf.mxu0
      %1631 = vmatprep.mubr.f32.mxu0 0.0
      %1632 = vmatmul.mubr.f32.gmra.mxu0 %v868
      %v1633 = vpop.f32.mrf.mxu0
      %v1634 = vadd.f32 0.0, %v1633
      %v1635 = vpop.f32.mrf.mxu0
      %1636 = vmatprep.mubr.f32.mxu0 0.0
      %1637 = vmatmul.mubr.f32.gmra.mxu0 %v871
      %v1638 = vpop.f32.mrf.mxu0
      %v1639 = vadd.f32 0.0, %v1638
      %v1640 = vpop.f32.mrf.mxu0
      %1641 = vmatprep.mubr.f32.mxu0 0.0
      %1642 = vmatmul.mubr.f32.gmra.mxu0 %v874
      %v1643 = vpop.f32.mrf.mxu0
      %v1644 = vadd.f32 0.0, %v1643
      %v1645 = vpop.f32.mrf.mxu0
      %1646 = vmatprep.mubr.f32.mxu0 0.0
      %1647 = vmatmul.mubr.f32.gmra.mxu0 %v877
      %v1648 = vpop.f32.mrf.mxu0
      %v1649 = vadd.f32 0.0, %v1648
      %v1650 = vpop.f32.mrf.mxu0
      %1651 = vmatprep.mubr.f32.mxu0 0.0
      %1652 = vmatmul.mubr.f32.gmra.mxu0 %v880
      %v1653 = vpop.f32.mrf.mxu0
      %v1654 = vadd.f32 0.0, %v1653
      %v1655 = vpop.f32.mrf.mxu0
      %1656 = vmatprep.mubr.f32.mxu0 0.0
      %1657 = vmatmul.mubr.f32.gmra.mxu0 %v883
      %v1658 = vpop.f32.mrf.mxu0
      %v1659 = vadd.f32 0.0, %v1658
      %v1660 = vpop.f32.mrf.mxu0
      %1661 = vdwg.mxu0
      %v1662 = vmul.f32 %v1344, 0.5
      %v1663 = vmul.f32 %v1349, 0.5
      %v1664 = vmul.f32 %v1354, 0.5
      %v1665 = vmul.f32 %v1359, 0.5
      %v1666 = vmul.f32 %v1364, 0.5
      %v1667 = vmul.f32 %v1369, 0.5
      %v1668 = vmul.f32 %v1374, 0.5
      %v1669 = vmul.f32 %v1379, 0.5
      %v1670 = vmul.f32 %v1384, 0.5
      %v1671 = vmul.f32 %v1389, 0.5
      %v1672 = vmul.f32 %v1394, 0.5
      %v1673 = vmul.f32 %v1399, 0.5
      %v1674 = vmul.f32 %v1404, 0.5
      %v1675 = vmul.f32 %v1409, 0.5
      %v1676 = vmul.f32 %v1414, 0.5
      %v1677 = vmul.f32 %v1419, 0.5
      %v1678 = vmul.f32 %v1424, 0.5
      %v1679 = vmul.f32 %v1429, 0.5
      %v1680 = vmul.f32 %v1434, 0.5
      %v1681 = vmul.f32 %v1439, 0.5
      %v1682 = vmul.f32 %v1444, 0.5
      %v1683 = vmul.f32 %v1449, 0.5
      %v1684 = vmul.f32 %v1454, 0.5
      %v1685 = vmul.f32 %v1459, 0.5
      %v1686 = vmul.f32 %v1464, 0.5
      %v1687 = vmul.f32 %v1469, 0.5
      %v1688 = vmul.f32 %v1474, 0.5
      %v1689 = vmul.f32 %v1479, 0.5
      %v1690 = vmul.f32 %v1484, 0.5
      %v1691 = vmul.f32 %v1489, 0.5
      %v1692 = vmul.f32 %v1494, 0.5
      %v1693 = vmul.f32 %v1499, 0.5
      %v1694 = vmul.f32 %v1504, 0.5
      %v1695 = vmul.f32 %v1509, 0.5
      %v1696 = vmul.f32 %v1514, 0.5
      %v1697 = vmul.f32 %v1519, 0.5
      %v1698 = vmul.f32 %v1524, 0.5
      %v1699 = vmul.f32 %v1529, 0.5
      %v1700 = vmul.f32 %v1534, 0.5
      %v1701 = vmul.f32 %v1539, 0.5
      %v1702 = vmul.f32 %v1544, 0.5
      %v1703 = vmul.f32 %v1549, 0.5
      %v1704 = vmul.f32 %v1554, 0.5
      %v1705 = vmul.f32 %v1559, 0.5
      %v1706 = vmul.f32 %v1564, 0.5
      %v1707 = vmul.f32 %v1569, 0.5
      %v1708 = vmul.f32 %v1574, 0.5
      %v1709 = vmul.f32 %v1579, 0.5
      %v1710 = vmul.f32 %v1584, 0.5
      %v1711 = vmul.f32 %v1589, 0.5
      %v1712 = vmul.f32 %v1594, 0.5
      %v1713 = vmul.f32 %v1599, 0.5
      %v1714 = vmul.f32 %v1604, 0.5
      %v1715 = vmul.f32 %v1609, 0.5
      %v1716 = vmul.f32 %v1614, 0.5
      %v1717 = vmul.f32 %v1619, 0.5
      %v1718 = vmul.f32 %v1624, 0.5
      %v1719 = vmul.f32 %v1629, 0.5
      %v1720 = vmul.f32 %v1634, 0.5
      %v1721 = vmul.f32 %v1639, 0.5
      %v1722 = vmul.f32 %v1644, 0.5
      %v1723 = vmul.f32 %v1649, 0.5
      %v1724 = vmul.f32 %v1654, 0.5
      %v1725 = vmul.f32 %v1659, 0.5
      %1790 = vrot.lane.b32.xlu0 %v1662, 64
      %v1791 = vpop.permute.xlu0 %1790
      %1792 = vrot.lane.b32.xlu0 %v1663, 64
      %v1793 = vpop.permute.xlu0 %1792
      %1794 = vrot.lane.b32.xlu0 %v1664, 64
      %v1795 = vpop.permute.xlu0 %1794
      %1796 = vrot.lane.b32.xlu0 %v1665, 64
      %v1797 = vpop.permute.xlu0 %1796
      %1798 = vrot.lane.b32.xlu0 %v1666, 64
      %v1799 = vpop.permute.xlu0 %1798
      %1800 = vrot.lane.b32.xlu0 %v1667, 64
      %v1801 = vpop.permute.xlu0 %1800
      %1802 = vrot.lane.b32.xlu0 %v1668, 64
      %v1803 = vpop.permute.xlu0 %1802
      %1804 = vrot.lane.b32.xlu0 %v1669, 64
      %v1805 = vpop.permute.xlu0 %1804
      %1806 = vrot.lane.b32.xlu0 %v1670, 64
      %v1807 = vpop.permute.xlu0 %1806
      %1808 = vrot.lane.b32.xlu0 %v1671, 64
      %v1809 = vpop.permute.xlu0 %1808
      %1810 = vrot.lane.b32.xlu0 %v1672, 64
      %v1811 = vpop.permute.xlu0 %1810
      %1812 = vrot.lane.b32.xlu0 %v1673, 64
      %v1813 = vpop.permute.xlu0 %1812
      %1814 = vrot.lane.b32.xlu0 %v1674, 64
      %v1815 = vpop.permute.xlu0 %1814
      %1816 = vrot.lane.b32.xlu0 %v1675, 64
      %v1817 = vpop.permute.xlu0 %1816
      %1818 = vrot.lane.b32.xlu0 %v1676, 64
      %v1819 = vpop.permute.xlu0 %1818
      %1820 = vrot.lane.b32.xlu0 %v1677, 64
      %v1821 = vpop.permute.xlu0 %1820
      %1822 = vrot.lane.b32.xlu0 %v1678, 64
      %v1823 = vpop.permute.xlu0 %1822
      %1824 = vrot.lane.b32.xlu0 %v1679, 64
      %v1825 = vpop.permute.xlu0 %1824
      %1826 = vrot.lane.b32.xlu0 %v1680, 64
      %v1827 = vpop.permute.xlu0 %1826
      %1828 = vrot.lane.b32.xlu0 %v1681, 64
      %v1829 = vpop.permute.xlu0 %1828
      %1830 = vrot.lane.b32.xlu0 %v1682, 64
      %v1831 = vpop.permute.xlu0 %1830
      %1832 = vrot.lane.b32.xlu0 %v1683, 64
      %v1833 = vpop.permute.xlu0 %1832
      %1834 = vrot.lane.b32.xlu0 %v1684, 64
      %v1835 = vpop.permute.xlu0 %1834
      %1836 = vrot.lane.b32.xlu0 %v1685, 64
      %v1837 = vpop.permute.xlu0 %1836
      %1838 = vrot.lane.b32.xlu0 %v1686, 64
      %v1839 = vpop.permute.xlu0 %1838
      %1840 = vrot.lane.b32.xlu0 %v1687, 64
      %v1841 = vpop.permute.xlu0 %1840
      %1842 = vrot.lane.b32.xlu0 %v1688, 64
      %v1843 = vpop.permute.xlu0 %1842
      %1844 = vrot.lane.b32.xlu0 %v1689, 64
      %v1845 = vpop.permute.xlu0 %1844
      %1846 = vrot.lane.b32.xlu0 %v1690, 64
      %v1847 = vpop.permute.xlu0 %1846
      %1848 = vrot.lane.b32.xlu0 %v1691, 64
      %v1849 = vpop.permute.xlu0 %1848
      %1850 = vrot.lane.b32.xlu0 %v1692, 64
      %v1851 = vpop.permute.xlu0 %1850
      %1852 = vrot.lane.b32.xlu0 %v1693, 64
      %v1853 = vpop.permute.xlu0 %1852
      %1854 = vrot.lane.b32.xlu0 %v1694, 64
      %v1855 = vpop.permute.xlu0 %1854
      %1856 = vrot.lane.b32.xlu0 %v1695, 64
      %v1857 = vpop.permute.xlu0 %1856
      %1858 = vrot.lane.b32.xlu0 %v1696, 64
      %v1859 = vpop.permute.xlu0 %1858
      %1860 = vrot.lane.b32.xlu0 %v1697, 64
      %v1861 = vpop.permute.xlu0 %1860
      %1862 = vrot.lane.b32.xlu0 %v1698, 64
      %v1863 = vpop.permute.xlu0 %1862
      %1864 = vrot.lane.b32.xlu0 %v1699, 64
      %v1865 = vpop.permute.xlu0 %1864
      %1866 = vrot.lane.b32.xlu0 %v1700, 64
      %v1867 = vpop.permute.xlu0 %1866
      %1868 = vrot.lane.b32.xlu0 %v1701, 64
      %v1869 = vpop.permute.xlu0 %1868
      %1870 = vrot.lane.b32.xlu0 %v1702, 64
      %v1871 = vpop.permute.xlu0 %1870
      %1872 = vrot.lane.b32.xlu0 %v1703, 64
      %v1873 = vpop.permute.xlu0 %1872
      %1874 = vrot.lane.b32.xlu0 %v1704, 64
      %v1875 = vpop.permute.xlu0 %1874
      %1876 = vrot.lane.b32.xlu0 %v1705, 64
      %v1877 = vpop.permute.xlu0 %1876
      %1878 = vrot.lane.b32.xlu0 %v1706, 64
      %v1879 = vpop.permute.xlu0 %1878
      %1880 = vrot.lane.b32.xlu0 %v1707, 64
      %v1881 = vpop.permute.xlu0 %1880
      %1882 = vrot.lane.b32.xlu0 %v1708, 64
      %v1883 = vpop.permute.xlu0 %1882
      %1884 = vrot.lane.b32.xlu0 %v1709, 64
      %v1885 = vpop.permute.xlu0 %1884
      %1886 = vrot.lane.b32.xlu0 %v1710, 64
      %v1887 = vpop.permute.xlu0 %1886
      %1888 = vrot.lane.b32.xlu0 %v1711, 64
      %v1889 = vpop.permute.xlu0 %1888
      %1890 = vrot.lane.b32.xlu0 %v1712, 64
      %v1891 = vpop.permute.xlu0 %1890
      %1892 = vrot.lane.b32.xlu0 %v1713, 64
      %v1893 = vpop.permute.xlu0 %1892
      %1894 = vrot.lane.b32.xlu0 %v1714, 64
      %v1895 = vpop.permute.xlu0 %1894
      %1896 = vrot.lane.b32.xlu0 %v1715, 64
      %v1897 = vpop.permute.xlu0 %1896
      %1898 = vrot.lane.b32.xlu0 %v1716, 64
      %v1899 = vpop.permute.xlu0 %1898
      %1900 = vrot.lane.b32.xlu0 %v1717, 64
      %v1901 = vpop.permute.xlu0 %1900
      %1902 = vrot.lane.b32.xlu0 %v1718, 64
      %v1903 = vpop.permute.xlu0 %1902
      %1904 = vrot.lane.b32.xlu0 %v1719, 64
      %v1905 = vpop.permute.xlu0 %1904
      %1906 = vrot.lane.b32.xlu0 %v1720, 64
      %v1907 = vpop.permute.xlu0 %1906
      %1908 = vrot.lane.b32.xlu0 %v1721, 64
      %v1909 = vpop.permute.xlu0 %1908
      %1910 = vrot.lane.b32.xlu0 %v1722, 64
      %v1911 = vpop.permute.xlu0 %1910
      %1912 = vrot.lane.b32.xlu0 %v1723, 64
      %v1913 = vpop.permute.xlu0 %1912
      %1914 = vrot.lane.b32.xlu0 %v1724, 64
      %v1915 = vpop.permute.xlu0 %1914
      %1916 = vrot.lane.b32.xlu0 %v1725, 64
      %v1917 = vpop.permute.xlu0 %1916
      %vm1982 = vcmask 523264
      %v1983 = vsel %vm1982, %v952, %v1791
      %v1984 = vsel %vm1982, %v957, %v1793
      %v1985 = vsel %vm1982, %v962, %v1795
      %v1986 = vsel %vm1982, %v967, %v1797
      %v1987 = vsel %vm1982, %v972, %v1799
      %v1988 = vsel %vm1982, %v977, %v1801
      %v1989 = vsel %vm1982, %v982, %v1803
      %v1990 = vsel %vm1982, %v987, %v1805
      %v1991 = vsel %vm1982, %v992, %v1807
      %v1992 = vsel %vm1982, %v997, %v1809
      %v1993 = vsel %vm1982, %v1002, %v1811
      %v1994 = vsel %vm1982, %v1007, %v1813
      %v1995 = vsel %vm1982, %v1012, %v1815
      %v1996 = vsel %vm1982, %v1017, %v1817
      %v1997 = vsel %vm1982, %v1022, %v1819
      %v1998 = vsel %vm1982, %v1027, %v1821
      %v1999 = vsel %vm1982, %v1032, %v1823
      %v2000 = vsel %vm1982, %v1037, %v1825
      %v2001 = vsel %vm1982, %v1042, %v1827
      %v2002 = vsel %vm1982, %v1047, %v1829
      %v2003 = vsel %vm1982, %v1052, %v1831
      %v2004 = vsel %vm1982, %v1057, %v1833
      %v2005 = vsel %vm1982, %v1062, %v1835
      %v2006 = vsel %vm1982, %v1067, %v1837
      %v2007 = vsel %vm1982, %v1072, %v1839
      %v2008 = vsel %vm1982, %v1077, %v1841
      %v2009 = vsel %vm1982, %v1082, %v1843
      %v2010 = vsel %vm1982, %v1087, %v1845
      %v2011 = vsel %vm1982, %v1092, %v1847
      %v2012 = vsel %vm1982, %v1097, %v1849
      %v2013 = vsel %vm1982, %v1102, %v1851
      %v2014 = vsel %vm1982, %v1107, %v1853
      %v2015 = vsel %vm1982, %v1112, %v1855
      %v2016 = vsel %vm1982, %v1117, %v1857
      %v2017 = vsel %vm1982, %v1122, %v1859
      %v2018 = vsel %vm1982, %v1127, %v1861
      %v2019 = vsel %vm1982, %v1132, %v1863
      %v2020 = vsel %vm1982, %v1137, %v1865
      %v2021 = vsel %vm1982, %v1142, %v1867
      %v2022 = vsel %vm1982, %v1147, %v1869
      %v2023 = vsel %vm1982, %v1152, %v1871
      %v2024 = vsel %vm1982, %v1157, %v1873
      %v2025 = vsel %vm1982, %v1162, %v1875
      %v2026 = vsel %vm1982, %v1167, %v1877
      %v2027 = vsel %vm1982, %v1172, %v1879
      %v2028 = vsel %vm1982, %v1177, %v1881
      %v2029 = vsel %vm1982, %v1182, %v1883
      %v2030 = vsel %vm1982, %v1187, %v1885
      %v2031 = vsel %vm1982, %v1192, %v1887
      %v2032 = vsel %vm1982, %v1197, %v1889
      %v2033 = vsel %vm1982, %v1202, %v1891
      %v2034 = vsel %vm1982, %v1207, %v1893
      %v2035 = vsel %vm1982, %v1212, %v1895
      %v2036 = vsel %vm1982, %v1217, %v1897
      %v2037 = vsel %vm1982, %v1222, %v1899
      %v2038 = vsel %vm1982, %v1227, %v1901
      %v2039 = vsel %vm1982, %v1232, %v1903
      %v2040 = vsel %vm1982, %v1237, %v1905
      %v2041 = vsel %vm1982, %v1242, %v1907
      %v2042 = vsel %vm1982, %v1247, %v1909
      %v2043 = vsel %vm1982, %v1252, %v1911
      %v2044 = vsel %vm1982, %v1257, %v1913
      %v2045 = vsel %vm1982, %v1262, %v1915
      %v2046 = vsel %vm1982, %v1267, %v1917
      %v2047 = vld [vmem:[#allocation7] sm:$0xff]
      %v2048 = vld [vmem:[#allocation7 + $0x8] sm:$0xff]
      %v2049 = vld [vmem:[#allocation7 + $0x10] sm:$0xff]
      %v2050 = vld [vmem:[#allocation7 + $0x18] sm:$0xff]
      %v2051 = vld [vmem:[#allocation7 + $0x20] sm:$0xff]
      %v2052 = vld [vmem:[#allocation7 + $0x28] sm:$0xff]
      %v2053 = vld [vmem:[#allocation7 + $0x30] sm:$0xff]
      %v2054 = vld [vmem:[#allocation7 + $0x38] sm:$0xff]
      %v2055 = vld [vmem:[#allocation7 + $0x40] sm:$0xff]
      %v2056 = vld [vmem:[#allocation7 + $0x48] sm:$0xff]
      %v2057 = vld [vmem:[#allocation7 + $0x50] sm:$0xff]
      %v2058 = vld [vmem:[#allocation7 + $0x58] sm:$0xff]
      %v2059 = vld [vmem:[#allocation7 + $0x60] sm:$0xff]
      %v2060 = vld [vmem:[#allocation7 + $0x68] sm:$0xff]
      %v2061 = vld [vmem:[#allocation7 + $0x70] sm:$0xff]
      %v2062 = vld [vmem:[#allocation7 + $0x78] sm:$0xff]
      %v2063 = vld [vmem:[#allocation7 + $0x80] sm:$0xff]
      %v2064 = vld [vmem:[#allocation7 + $0x88] sm:$0xff]
      %v2065 = vld [vmem:[#allocation7 + $0x90] sm:$0xff]
      %v2066 = vld [vmem:[#allocation7 + $0x98] sm:$0xff]
      %v2067 = vld [vmem:[#allocation7 + $0xa0] sm:$0xff]
      %v2068 = vld [vmem:[#allocation7 + $0xa8] sm:$0xff]
      %v2069 = vld [vmem:[#allocation7 + $0xb0] sm:$0xff]
      %v2070 = vld [vmem:[#allocation7 + $0xb8] sm:$0xff]
      %v2071 = vld [vmem:[#allocation7 + $0xc0] sm:$0xff]
      %v2072 = vld [vmem:[#allocation7 + $0xc8] sm:$0xff]
      %v2073 = vld [vmem:[#allocation7 + $0xd0] sm:$0xff]
      %v2074 = vld [vmem:[#allocation7 + $0xd8] sm:$0xff]
      %v2075 = vld [vmem:[#allocation7 + $0xe0] sm:$0xff]
      %v2076 = vld [vmem:[#allocation7 + $0xe8] sm:$0xff]
      %v2077 = vld [vmem:[#allocation7 + $0xf0] sm:$0xff]
      %v2078 = vld [vmem:[#allocation7 + $0xf8] sm:$0xff]
      %v2079 = vld [vmem:[#allocation7 + $0x100] sm:$0xff]
      %v2080 = vld [vmem:[#allocation7 + $0x108] sm:$0xff]
      %v2081 = vld [vmem:[#allocation7 + $0x110] sm:$0xff]
      %v2082 = vld [vmem:[#allocation7 + $0x118] sm:$0xff]
      %v2083 = vld [vmem:[#allocation7 + $0x120] sm:$0xff]
      %v2084 = vld [vmem:[#allocation7 + $0x128] sm:$0xff]
      %v2085 = vld [vmem:[#allocation7 + $0x130] sm:$0xff]
      %v2086 = vld [vmem:[#allocation7 + $0x138] sm:$0xff]
      %v2087 = vld [vmem:[#allocation7 + $0x140] sm:$0xff]
      %v2088 = vld [vmem:[#allocation7 + $0x148] sm:$0xff]
      %v2089 = vld [vmem:[#allocation7 + $0x150] sm:$0xff]
      %v2090 = vld [vmem:[#allocation7 + $0x158] sm:$0xff]
      %v2091 = vld [vmem:[#allocation7 + $0x160] sm:$0xff]
      %v2092 = vld [vmem:[#allocation7 + $0x168] sm:$0xff]
      %v2093 = vld [vmem:[#allocation7 + $0x170] sm:$0xff]
      %v2094 = vld [vmem:[#allocation7 + $0x178] sm:$0xff]
      %v2095 = vld [vmem:[#allocation7 + $0x180] sm:$0xff]
      %v2096 = vld [vmem:[#allocation7 + $0x188] sm:$0xff]
      %v2097 = vld [vmem:[#allocation7 + $0x190] sm:$0xff]
      %v2098 = vld [vmem:[#allocation7 + $0x198] sm:$0xff]
      %v2099 = vld [vmem:[#allocation7 + $0x1a0] sm:$0xff]
      %v2100 = vld [vmem:[#allocation7 + $0x1a8] sm:$0xff]
      %v2101 = vld [vmem:[#allocation7 + $0x1b0] sm:$0xff]
      %v2102 = vld [vmem:[#allocation7 + $0x1b8] sm:$0xff]
      %v2103 = vld [vmem:[#allocation7 + $0x1c0] sm:$0xff]
      %v2104 = vld [vmem:[#allocation7 + $0x1c8] sm:$0xff]
      %v2105 = vld [vmem:[#allocation7 + $0x1d0] sm:$0xff]
      %v2106 = vld [vmem:[#allocation7 + $0x1d8] sm:$0xff]
      %v2107 = vld [vmem:[#allocation7 + $0x1e0] sm:$0xff]
      %v2108 = vld [vmem:[#allocation7 + $0x1e8] sm:$0xff]
      %v2109 = vld [vmem:[#allocation7 + $0x1f0] sm:$0xff]
      %v2110 = vld [vmem:[#allocation7 + $0x1f8] sm:$0xff]
      %v2111 = vadd.f32 %v2047, %v1983
      %v2112 = vadd.f32 %v2048, %v1984
      %v2113 = vadd.f32 %v2049, %v1985
      %v2114 = vadd.f32 %v2050, %v1986
      %v2115 = vadd.f32 %v2051, %v1987
      %v2116 = vadd.f32 %v2052, %v1988
      %v2117 = vadd.f32 %v2053, %v1989
      %v2118 = vadd.f32 %v2054, %v1990
      %v2119 = vadd.f32 %v2055, %v1991
      %v2120 = vadd.f32 %v2056, %v1992
      %v2121 = vadd.f32 %v2057, %v1993
      %v2122 = vadd.f32 %v2058, %v1994
      %v2123 = vadd.f32 %v2059, %v1995
      %v2124 = vadd.f32 %v2060, %v1996
      %v2125 = vadd.f32 %v2061, %v1997
      %v2126 = vadd.f32 %v2062, %v1998
      %v2127 = vadd.f32 %v2063, %v1999
      %v2128 = vadd.f32 %v2064, %v2000
      %v2129 = vadd.f32 %v2065, %v2001
      %v2130 = vadd.f32 %v2066, %v2002
      %v2131 = vadd.f32 %v2067, %v2003
      %v2132 = vadd.f32 %v2068, %v2004
      %v2133 = vadd.f32 %v2069, %v2005
      %v2134 = vadd.f32 %v2070, %v2006
      %v2135 = vadd.f32 %v2071, %v2007
      %v2136 = vadd.f32 %v2072, %v2008
      %v2137 = vadd.f32 %v2073, %v2009
      %v2138 = vadd.f32 %v2074, %v2010
      %v2139 = vadd.f32 %v2075, %v2011
      %v2140 = vadd.f32 %v2076, %v2012
      %v2141 = vadd.f32 %v2077, %v2013
      %v2142 = vadd.f32 %v2078, %v2014
      %v2143 = vadd.f32 %v2079, %v2015
      %v2144 = vadd.f32 %v2080, %v2016
      %v2145 = vadd.f32 %v2081, %v2017
      %v2146 = vadd.f32 %v2082, %v2018
      %v2147 = vadd.f32 %v2083, %v2019
      %v2148 = vadd.f32 %v2084, %v2020
      %v2149 = vadd.f32 %v2085, %v2021
      %v2150 = vadd.f32 %v2086, %v2022
      %v2151 = vadd.f32 %v2087, %v2023
      %v2152 = vadd.f32 %v2088, %v2024
      %v2153 = vadd.f32 %v2089, %v2025
      %v2154 = vadd.f32 %v2090, %v2026
      %v2155 = vadd.f32 %v2091, %v2027
      %v2156 = vadd.f32 %v2092, %v2028
      %v2157 = vadd.f32 %v2093, %v2029
      %v2158 = vadd.f32 %v2094, %v2030
      %v2159 = vadd.f32 %v2095, %v2031
      %v2160 = vadd.f32 %v2096, %v2032
      %v2161 = vadd.f32 %v2097, %v2033
      %v2162 = vadd.f32 %v2098, %v2034
      %v2163 = vadd.f32 %v2099, %v2035
      %v2164 = vadd.f32 %v2100, %v2036
      %v2165 = vadd.f32 %v2101, %v2037
      %v2166 = vadd.f32 %v2102, %v2038
      %v2167 = vadd.f32 %v2103, %v2039
      %v2168 = vadd.f32 %v2104, %v2040
      %v2169 = vadd.f32 %v2105, %v2041
      %v2170 = vadd.f32 %v2106, %v2042
      %v2171 = vadd.f32 %v2107, %v2043
      %v2172 = vadd.f32 %v2108, %v2044
      %v2173 = vadd.f32 %v2109, %v2045
      %v2174 = vadd.f32 %v2110, %v2046
      %2175 = vst [vmem:[#allocation7] sm:$0xff] %v2111
      %2176 = vst [vmem:[#allocation7 + $0x8] sm:$0xff] %v2112
      %2177 = vst [vmem:[#allocation7 + $0x10] sm:$0xff] %v2113
      %2178 = vst [vmem:[#allocation7 + $0x18] sm:$0xff] %v2114
      %2179 = vst [vmem:[#allocation7 + $0x20] sm:$0xff] %v2115
      %2180 = vst [vmem:[#allocation7 + $0x28] sm:$0xff] %v2116
      %2181 = vst [vmem:[#allocation7 + $0x30] sm:$0xff] %v2117
      %2182 = vst [vmem:[#allocation7 + $0x38] sm:$0xff] %v2118
      %2183 = vst [vmem:[#allocation7 + $0x40] sm:$0xff] %v2119
      %2184 = vst [vmem:[#allocation7 + $0x48] sm:$0xff] %v2120
      %2185 = vst [vmem:[#allocation7 + $0x50] sm:$0xff] %v2121
      %2186 = vst [vmem:[#allocation7 + $0x58] sm:$0xff] %v2122
      %2187 = vst [vmem:[#allocation7 + $0x60] sm:$0xff] %v2123
      %2188 = vst [vmem:[#allocation7 + $0x68] sm:$0xff] %v2124
      %2189 = vst [vmem:[#allocation7 + $0x70] sm:$0xff] %v2125
      %2190 = vst [vmem:[#allocation7 + $0x78] sm:$0xff] %v2126
      %2191 = vst [vmem:[#allocation7 + $0x80] sm:$0xff] %v2127
      %2192 = vst [vmem:[#allocation7 + $0x88] sm:$0xff] %v2128
      %2193 = vst [vmem:[#allocation7 + $0x90] sm:$0xff] %v2129
      %2194 = vst [vmem:[#allocation7 + $0x98] sm:$0xff] %v2130
      %2195 = vst [vmem:[#allocation7 + $0xa0] sm:$0xff] %v2131
      %2196 = vst [vmem:[#allocation7 + $0xa8] sm:$0xff] %v2132
      %2197 = vst [vmem:[#allocation7 + $0xb0] sm:$0xff] %v2133
      %2198 = vst [vmem:[#allocation7 + $0xb8] sm:$0xff] %v2134
      %2199 = vst [vmem:[#allocation7 + $0xc0] sm:$0xff] %v2135
      %2200 = vst [vmem:[#allocation7 + $0xc8] sm:$0xff] %v2136
      %2201 = vst [vmem:[#allocation7 + $0xd0] sm:$0xff] %v2137
      %2202 = vst [vmem:[#allocation7 + $0xd8] sm:$0xff] %v2138
      %2203 = vst [vmem:[#allocation7 + $0xe0] sm:$0xff] %v2139
      %2204 = vst [vmem:[#allocation7 + $0xe8] sm:$0xff] %v2140
      %2205 = vst [vmem:[#allocation7 + $0xf0] sm:$0xff] %v2141
      %2206 = vst [vmem:[#allocation7 + $0xf8] sm:$0xff] %v2142
      %2207 = vst [vmem:[#allocation7 + $0x100] sm:$0xff] %v2143
      %2208 = vst [vmem:[#allocation7 + $0x108] sm:$0xff] %v2144
      %2209 = vst [vmem:[#allocation7 + $0x110] sm:$0xff] %v2145
      %2210 = vst [vmem:[#allocation7 + $0x118] sm:$0xff] %v2146
      %2211 = vst [vmem:[#allocation7 + $0x120] sm:$0xff] %v2147
      %2212 = vst [vmem:[#allocation7 + $0x128] sm:$0xff] %v2148
      %2213 = vst [vmem:[#allocation7 + $0x130] sm:$0xff] %v2149
      %2214 = vst [vmem:[#allocation7 + $0x138] sm:$0xff] %v2150
      %2215 = vst [vmem:[#allocation7 + $0x140] sm:$0xff] %v2151
      %2216 = vst [vmem:[#allocation7 + $0x148] sm:$0xff] %v2152
      %2217 = vst [vmem:[#allocation7 + $0x150] sm:$0xff] %v2153
      %2218 = vst [vmem:[#allocation7 + $0x158] sm:$0xff] %v2154
      %2219 = vst [vmem:[#allocation7 + $0x160] sm:$0xff] %v2155
      %2220 = vst [vmem:[#allocation7 + $0x168] sm:$0xff] %v2156
      %2221 = vst [vmem:[#allocation7 + $0x170] sm:$0xff] %v2157
      %2222 = vst [vmem:[#allocation7 + $0x178] sm:$0xff] %v2158
      %2223 = vst [vmem:[#allocation7 + $0x180] sm:$0xff] %v2159
      %2224 = vst [vmem:[#allocation7 + $0x188] sm:$0xff] %v2160
      %2225 = vst [vmem:[#allocation7 + $0x190] sm:$0xff] %v2161
      %2226 = vst [vmem:[#allocation7 + $0x198] sm:$0xff] %v2162
      %2227 = vst [vmem:[#allocation7 + $0x1a0] sm:$0xff] %v2163
      %2228 = vst [vmem:[#allocation7 + $0x1a8] sm:$0xff] %v2164
      %2229 = vst [vmem:[#allocation7 + $0x1b0] sm:$0xff] %v2165
      %2230 = vst [vmem:[#allocation7 + $0x1b8] sm:$0xff] %v2166
      %2231 = vst [vmem:[#allocation7 + $0x1c0] sm:$0xff] %v2167
      %2232 = vst [vmem:[#allocation7 + $0x1c8] sm:$0xff] %v2168
      %2233 = vst [vmem:[#allocation7 + $0x1d0] sm:$0xff] %v2169
      %2234 = vst [vmem:[#allocation7 + $0x1d8] sm:$0xff] %v2170
      %2235 = vst [vmem:[#allocation7 + $0x1e0] sm:$0xff] %v2171
      %2236 = vst [vmem:[#allocation7 + $0x1e8] sm:$0xff] %v2172
      %2237 = vst [vmem:[#allocation7 + $0x1f0] sm:$0xff] %v2173
      %2238 = vst [vmem:[#allocation7 + $0x1f8] sm:$0xff] %v2174
    $region14: #{tpu_custom_call.1} parent=1 // loop_footer
      %s293 = sadd.s32 %s291, 1
    $region15: #{tpu_custom_call.1} parent=1 // loop_footer_branch
      %290 = sbr.rel target = $region11
    $region16: #{tpu_custom_call.1} parent=1 // loop_exit
      _
    // Predicated region
    $region17: #{tpu_custom_call.1} parent=1 // pred_check
      _
    $region18: #{tpu_custom_call.1} parent=1 // pred_check_branch
      %2240 = sbr.rel (0) target = $region20
    $region19: #{tpu_custom_call.1} parent=1 // pred_region
      %s2242 = ssub.s32 8192, 8192
      %2243 = vsyncadd [#allocation8], %s2242
      %s2244 = sshll.u32 [#allocation7], 4
      %s2245 = int_to_ptr.vmem [resolvable:$true] %s2244
      %2250 = dma.vmem_to_hbm [thread:$0]  %s2245, 8192, %s6, [#allocation8], 128, 128, 8
    $region20: #{tpu_custom_call.1} parent=1 // pred_fallthru
      _
    // Predicated region
    $region21: #{tpu_custom_call.1} parent=1 // pred_check
      _
    $region22: #{tpu_custom_call.1} parent=1 // pred_check_branch
      %2252 = sbr.rel (0) target = $region24
    $region23: #{tpu_custom_call.1} parent=1 // pred_region
      %2253 = dma.done [#allocation8], 8192
    $region24: #{tpu_custom_call.1} parent=1 // pred_fallthru
      _
    %2254 = vsyncpa [#allocation8], 1

</llo_original>
